<compile_context>
chip_gen: v7x
topology: tpu7x:2x2x1
jax: 0.10.0
libtpu: 0.0.40
codegen_flags: <defaults>
</compile_context>

<pallas_src>
import numpy as np
import jax
import jax.numpy as jnp
from jax.experimental import pallas as pl
from jax.experimental.pallas import tpu as pltpu

_EPS = 1e-5
_C1, _C2 = 10, 20      # real channel counts of the two stages
_CP1, _CP2 = 16, 24    # sublane-padded channel counts


# --------------------------------- kernel ---------------------------------- #
def _make_kernel(L, num_classes):
    Lp, T = L // 2, L // 4
    R1, R2, RF = L * _CP1, Lp * _CP2, T * _CP2

    def kernel(x_ref, w1_ref, wa_ref, wb_ref, wds_ref, wc_ref, wd_ref,
               wfc_ref, v_ref, o_ref):
        x = x_ref[...]                                   # (L, bt) lane-dense
        bt = x.shape[-1]
        V = v_ref[...]                                   # (RV, 8) shift columns

        def shift(col, rows):                            # (rows, 1) -> lane bcast
            return V[:rows, col:col + 1]

        # conv1 -> bn1 -> relu      (BN scale folded into the banded weights)
        h = jnp.maximum(
            jnp.dot(w1_ref[...], x, preferred_element_type=jnp.float32)
            + shift(0, R1), 0.0)

        # residual block 1 (10 -> 10)
        idn = h
        o = jnp.maximum(
            jnp.dot(wa_ref[...], h, preferred_element_type=jnp.float32)
            + shift(1, R1), 0.0)
        o = jnp.dot(wb_ref[...], o, preferred_element_type=jnp.float32) \
            + shift(2, R1)
        h = jnp.maximum(o + idn, 0.0)

        # pool1: L positions -> L/2  (tile-aligned reshape + max)
        h = h.reshape(Lp, 2 * _CP1, bt)
        h = jnp.maximum(h[:, :_CP1, :], h[:, _CP1:, :]).reshape(Lp * _CP1, bt)

        # residual block 2 (10 -> 20), downsample = Conv1d(10, 20, k=1)
        idn = jnp.dot(wds_ref[...], h, preferred_element_type=jnp.float32) \
            + shift(3, R2)
        o = jnp.maximum(
            jnp.dot(wc_ref[...], h, preferred_element_type=jnp.float32)
            + shift(4, R2), 0.0)
        o = jnp.dot(wd_ref[...], o, preferred_element_type=jnp.float32) \
            + shift(5, R2)
        h = jnp.maximum(o + idn, 0.0)

        # pool2: L/2 positions -> L/4
        h = h.reshape(T, 2 * _CP2, bt)
        h = jnp.maximum(h[:, :_CP2, :], h[:, _CP2:, :]).reshape(RF, bt)

        # fc (single dot) + softmax
        logits = jnp.dot(wfc_ref[...], h, preferred_element_type=jnp.float32) \
            + shift(6, num_classes)
        z = logits - jnp.max(logits, axis=0, keepdims=True)
        e = jnp.exp(z)
        o_ref[...] = e * pl.reciprocal(jnp.sum(e, axis=0, keepdims=True),
                                       approx=True)

    return kernel


# -------------------------- parameter packing ------------------------------- #
def _pack_params(P, L, num_classes):
    """Fold eval-mode BN + conv biases; build per-layer banded matmul weights
    and per-row shift columns (position-major, channel-padded)."""
    Lp, T = L // 2, L // 4

    def f32(a):
        return np.asarray(a, np.float32)

    def fold(bn, conv_b):                     # BN(conv(x)+b) == s*conv(x) + t
        s = f32(bn['g']) / np.sqrt(f32(bn['v']) + _EPS)
        t = f32(bn['b']) - s * f32(bn['m']) + s * f32(conv_b)
        return s, t

    def band(w, Lpos, cp_out, cp_in, scale):
        w = f32(w)                            # (cout, cin, k)
        cout, cin, k = w.shape
        if scale is not None:
            w = w * scale[:, None, None]      # fold BN scale into the rows
        lp = (k - 1) // 2                     # PyTorch 'same' left pad
        B = np.zeros((Lpos * cp_out, Lpos * cp_in), np.float32)
        for lo in range(Lpos):
            for j in range(k):
                li = lo + j - lp
                if 0 <= li < Lpos:            # out-of-range taps == zero pad
                    B[lo * cp_out:lo * cp_out + cout,
                      li * cp_in:li * cp_in + cin] = w[:, :, j]
        return B

    def tiled(vec, Lpos, cp):
        col = np.zeros((Lpos * cp,), np.float32)
        for l in range(Lpos):
            col[l * cp:l * cp + vec.shape[0]] = vec
        return col

    s1, t1 = fold(P['bn1'], P['conv1_b'])
    s1a, t1a = fold(P['rb1_bn1'], P['rb1_c1_b'])
    s1b, t1b = fold(P['rb1_bn2'], P['rb1_c2_b'])
    s2a, t2a = fold(P['rb2_bn1'], P['rb2_c1_b'])
    s2b, t2b = fold(P['rb2_bn2'], P['rb2_c2_b'])

    w1 = band(P['conv1_w'], L, _CP1, 1, s1)
    wa = band(P['rb1_c1_w'], L, _CP1, _CP1, s1a)
    wb = band(P['rb1_c2_w'], L, _CP1, _CP1, s1b)
    wds = band(P['rb2_ds_w'], Lp, _CP2, _CP1, None)
    wc = band(P['rb2_c1_w'], Lp, _CP2, _CP1, s2a)
    wd = band(P['rb2_c2_w'], Lp, _CP2, _CP2, s2b)

    # fc: PyTorch flattens channel-major (feature = c*T + t); the pooled slab
    # is position-major (row = t*_CP2 + c) -> permute the fc columns to match.
    wfc3 = f32(P['fc_w']).reshape(num_classes, _C2, T)
    wfc = np.zeros((num_classes, T * _CP2), np.float32)
    for t in range(T):
        wfc[:, t * _CP2:t * _CP2 + _C2] = wfc3[:, :, t]

    rv = max(L * _CP1, Lp * _CP2, ((num_classes + 7) // 8) * 8)
    v = np.zeros((rv, 8), np.float32)
    v[:L * _CP1, 0] = tiled(t1, L, _CP1)
    v[:L * _CP1, 1] = tiled(t1a, L, _CP1)
    v[:L * _CP1, 2] = tiled(t1b, L, _CP1)
    v[:Lp * _CP2, 3] = tiled(f32(P['rb2_ds_b']), Lp, _CP2)
    v[:Lp * _CP2, 4] = tiled(t2a, Lp, _CP2)
    v[:Lp * _CP2, 5] = tiled(t2b, Lp, _CP2)
    v[:num_classes, 6] = f32(P['fc_b'])

    weights = tuple(jnp.asarray(a) for a in (w1, wa, wb, wds, wc, wd, wfc))
    return weights, jnp.asarray(v)


# --------------------------------- wrapper ---------------------------------- #
def fault_diagnosis_forward(x_ncl, P, num_classes):
    B, cin, L = x_ncl.shape
    assert cin == 1 and L % 4 == 0
    # TODO(synk): for large input_size (e.g. 500) the banded matmul should be
    # blocked over position windows; this version targets small L (<= 64).
    assert L * _CP1 <= 1024, "banded-matmul variant supports L <= 64"

    bt = int(min(512, ((B + 127) // 128) * 128))       # batch lanes per step
    B_pad = ((B + bt - 1) // bt) * bt

    # (B, 1, L) -> (L, B_pad): positions on sublanes, samples on lanes.
    x_lb = jnp.transpose(x_ncl[:, 0, :], (1, 0)).astype(jnp.float32)
    if B_pad != B:
        x_lb = jnp.pad(x_lb, ((0, 0), (0, B_pad - B)))

    weights, v_slab = _pack_params(P, L, num_classes)
    kernel = _make_kernel(L, num_classes)

    in_specs = [pl.BlockSpec((L, bt), lambda b: (0, b))]
    in_specs += [pl.BlockSpec(w.shape, lambda b: (0, 0)) for w in weights]
    in_specs += [pl.BlockSpec(v_slab.shape, lambda b: (0, 0))]

    out = pl.pallas_call(
        kernel,
        out_shape=jax.ShapeDtypeStruct((num_classes, B_pad), jnp.float32),
        grid=(B_pad // bt,),
        in_specs=in_specs,
        out_specs=pl.BlockSpec((num_classes, bt), lambda b: (0, b)),
        compiler_params=pltpu.CompilerParams(
            dimension_semantics=("parallel",)),
    )(x_lb, *weights, v_slab)

    return jnp.transpose(out[:, :B], (1, 0))            # (B, num_classes)


# -------------------------- parameters (PyTorch-shaped) --------------------- #
def init_params(key, L, num_classes):
    T = L // 4
    ks = iter(jax.random.split(key, 64))

    def nrm(shape, scale=0.1):
        return scale * jax.random.normal(next(ks), shape, jnp.float32)

    def unif(shape, lo=0.5, hi=1.5):
        return jax.random.uniform(next(ks), shape, jnp.float32, lo, hi)

    def bn(c):
        return dict(g=unif((c,)), b=nrm((c,)), m=nrm((c,)), v=unif((c,)))

    return dict(
        conv1_w=nrm((10, 1, 10)), conv1_b=nrm((10,)), bn1=bn(10),
        rb1_c1_w=nrm((10, 10, 10)), rb1_c1_b=nrm((10,)), rb1_bn1=bn(10),
        rb1_c2_w=nrm((10, 10, 10)), rb1_c2_b=nrm((10,)), rb1_bn2=bn(10),
        rb2_ds_w=nrm((20, 10, 1)), rb2_ds_b=nrm((20,)),
        rb2_c1_w=nrm((20, 10, 10)), rb2_c1_b=nrm((20,)), rb2_bn1=bn(20),
        rb2_c2_w=nrm((20, 20, 10)), rb2_c2_b=nrm((20,)), rb2_bn2=bn(20),
        fc_w=nrm((num_classes, 20 * T)), fc_b=nrm((num_classes,)),
    )


# ------------------------- pure-JAX reference (check) ----------------------- #
def reference_forward(x_ncl, P, num_classes):
    relu = lambda v: jnp.maximum(v, 0.0)

    def conv(x, w, b, pad):
        out = jax.lax.conv_general_dilated(
            x, w, window_strides=(1,), padding=[pad],
            dimension_numbers=('NCH', 'OIH', 'NCH'))
        return out + b[None, :, None]

    def bn(x, d):
        return (d['g'][None, :, None] * (x - d['m'][None, :, None])
                / jnp.sqrt(d['v'][None, :, None] + _EPS)
                + d['b'][None, :, None])

    def pool(x):
        B, C, L = x.shape
        return jnp.max(x.reshape(B, C, L // 2, 2), axis=-1)

    h = relu(bn(conv(x_ncl, P['conv1_w'], P['conv1_b'], (4, 5)), P['bn1']))
    idn = h
    o = relu(bn(conv(h, P['rb1_c1_w'], P['rb1_c1_b'], (4, 5)), P['rb1_bn1']))
    o = bn(conv(o, P['rb1_c2_w'], P['rb1_c2_b'], (4, 5)), P['rb1_bn2'])
    h = relu(o + idn)
    h = pool(h)
    idn = conv(h, P['rb2_ds_w'], P['rb2_ds_b'], (0, 0))
    o = relu(bn(conv(h, P['rb2_c1_w'], P['rb2_c1_b'], (4, 5)), P['rb2_bn1']))
    o = bn(conv(o, P['rb2_c2_w'], P['rb2_c2_b'], (4, 5)), P['rb2_bn2'])
    h = relu(o + idn)
    h = pool(h)
    flat = h.reshape(h.shape[0], -1)                    # channel-major flatten
    logits = flat @ P['fc_w'].T + P['fc_b'][None, :]
    return jax.nn.softmax(logits, axis=1)


# ---------------------------------- main ------------------------------------ #
if __name__ == "__main__":
    key = jax.random.PRNGKey(0)
    k_x, k_p = jax.random.split(key)

    B, L, num_classes = 2, 16, 4          # small input_size=16 (divisible by 4)
    x = jax.random.normal(k_x, (B, 1, L), jnp.float32)   # NCL like PyTorch
    P = init_params(k_p, L, num_classes)

    out = fault_diagnosis_forward(x, P, num_classes)
    out = jax.block_until_ready(out)

    ref = reference_forward(x, P, num_classes)
    assert out.shape == (B, num_classes)
    # tolerance loosened slightly: softmax uses the EUP approximate reciprocal
    assert bool(jnp.allclose(out, ref, atol=2e-3, rtol=2e-3)), (out, ref)
    print("KERNEL_OK")
</pallas_src>

<mosaic_0001>
module attributes {stable_mosaic.version = 11 : i64} {
  func.func @kernel(%arg0: i32, %arg1: memref<16x128xf32, #tpu.memory_space<vmem>>, %arg2: memref<256x16xf32, #tpu.memory_space<vmem>>, %arg3: memref<256x256xf32, #tpu.memory_space<vmem>>, %arg4: memref<256x256xf32, #tpu.memory_space<vmem>>, %arg5: memref<192x128xf32, #tpu.memory_space<vmem>>, %arg6: memref<192x128xf32, #tpu.memory_space<vmem>>, %arg7: memref<192x192xf32, #tpu.memory_space<vmem>>, %arg8: memref<4x96xf32, #tpu.memory_space<vmem>>, %arg9: memref<256x8xf32, #tpu.memory_space<vmem>>, %arg10: memref<4x128xf32, #tpu.memory_space<vmem>>) attributes {dimension_semantics = [#tpu.dimension_semantics<parallel>], iteration_bounds = array<i64: 1>, scalar_prefetch = 0 : i64, scratch_operands = 0 : i64, tpu.core_type = #tpu.core_type<tc>, window_params = [{transform_indices = @transform_0, window_bounds = array<i64: 16, 128>}, {pipeline_mode = #tpu.pipeline_mode<synchronous>, transform_indices = @transform_1, window_bounds = array<i64: 256, 16>}, {pipeline_mode = #tpu.pipeline_mode<synchronous>, transform_indices = @transform_2, window_bounds = array<i64: 256, 256>}, {pipeline_mode = #tpu.pipeline_mode<synchronous>, transform_indices = @transform_3, window_bounds = array<i64: 256, 256>}, {pipeline_mode = #tpu.pipeline_mode<synchronous>, transform_indices = @transform_4, window_bounds = array<i64: 192, 128>}, {pipeline_mode = #tpu.pipeline_mode<synchronous>, transform_indices = @transform_5, window_bounds = array<i64: 192, 128>}, {pipeline_mode = #tpu.pipeline_mode<synchronous>, transform_indices = @transform_6, window_bounds = array<i64: 192, 192>}, {pipeline_mode = #tpu.pipeline_mode<synchronous>, transform_indices = @transform_7, window_bounds = array<i64: 4, 96>}, {pipeline_mode = #tpu.pipeline_mode<synchronous>, transform_indices = @transform_8, window_bounds = array<i64: 256, 8>}, {transform_indices = @transform_9, window_bounds = array<i64: 4, 128>}]} {
    %c0 = arith.constant 0 : index
    %c0_0 = arith.constant 0 : index
    %0 = vector.load %arg1[%c0, %c0_0] : memref<16x128xf32, #tpu.memory_space<vmem>>, vector<16x128xf32>
    %c0_1 = arith.constant 0 : index
    %c0_2 = arith.constant 0 : index
    %1 = vector.load %arg9[%c0_1, %c0_2] : memref<256x8xf32, #tpu.memory_space<vmem>>, vector<256x8xf32>
    %c0_3 = arith.constant 0 : index
    %c0_4 = arith.constant 0 : index
    %2 = vector.load %arg2[%c0_3, %c0_4] : memref<256x16xf32, #tpu.memory_space<vmem>>, vector<256x16xf32>
    %cst = arith.constant dense<0.000000e+00> : vector<256x128xf32>
    %3 = tpu.matmul %2, %0, %cst {dimension_numbers = #tpu.dot_dimension_numbers<[1], [0], [0], [1], [0, 0, 1, 1], [], []>} : vector<256x16xf32>, vector<16x128xf32>, vector<256x128xf32> -> vector<256x128xf32>
    %4 = vector.extract_strided_slice %1 {offsets = [0, 0], sizes = [256, 1], strides = [1, 1]} : vector<256x8xf32> to vector<256x1xf32>
    %5 = vector.broadcast %4 : vector<256x1xf32> to vector<256x128xf32>
    %6 = arith.addf %3, %5 : vector<256x128xf32>
    %cst_5 = arith.constant 0.000000e+00 : f32
    %7 = vector.broadcast %cst_5 : f32 to vector<256x128xf32>
    %8 = arith.maximumf %6, %7 : vector<256x128xf32>
    %c0_6 = arith.constant 0 : index
    %c0_7 = arith.constant 0 : index
    %9 = vector.load %arg3[%c0_6, %c0_7] : memref<256x256xf32, #tpu.memory_space<vmem>>, vector<256x256xf32>
    %cst_8 = arith.constant dense<0.000000e+00> : vector<256x128xf32>
    %10 = tpu.matmul %9, %8, %cst_8 {dimension_numbers = #tpu.dot_dimension_numbers<[1], [0], [0], [1], [0, 0, 1, 1], [], []>} : vector<256x256xf32>, vector<256x128xf32>, vector<256x128xf32> -> vector<256x128xf32>
    %11 = vector.extract_strided_slice %1 {offsets = [0, 1], sizes = [256, 1], strides = [1, 1]} : vector<256x8xf32> to vector<256x1xf32>
    %12 = vector.broadcast %11 : vector<256x1xf32> to vector<256x128xf32>
    %13 = arith.addf %10, %12 : vector<256x128xf32>
    %cst_9 = arith.constant 0.000000e+00 : f32
    %14 = vector.broadcast %cst_9 : f32 to vector<256x128xf32>
    %15 = arith.maximumf %13, %14 : vector<256x128xf32>
    %c0_10 = arith.constant 0 : index
    %c0_11 = arith.constant 0 : index
    %16 = vector.load %arg4[%c0_10, %c0_11] : memref<256x256xf32, #tpu.memory_space<vmem>>, vector<256x256xf32>
    %cst_12 = arith.constant dense<0.000000e+00> : vector<256x128xf32>
    %17 = tpu.matmul %16, %15, %cst_12 {dimension_numbers = #tpu.dot_dimension_numbers<[1], [0], [0], [1], [0, 0, 1, 1], [], []>} : vector<256x256xf32>, vector<256x128xf32>, vector<256x128xf32> -> vector<256x128xf32>
    %18 = vector.extract_strided_slice %1 {offsets = [0, 2], sizes = [256, 1], strides = [1, 1]} : vector<256x8xf32> to vector<256x1xf32>
    %19 = vector.broadcast %18 : vector<256x1xf32> to vector<256x128xf32>
    %20 = arith.addf %17, %19 : vector<256x128xf32>
    %21 = arith.addf %20, %8 : vector<256x128xf32>
    %cst_13 = arith.constant 0.000000e+00 : f32
    %22 = vector.broadcast %cst_13 : f32 to vector<256x128xf32>
    %23 = arith.maximumf %21, %22 : vector<256x128xf32>
    %24 = vector.shape_cast %23 : vector<256x128xf32> to vector<8x32x128xf32>
    %25 = vector.extract_strided_slice %24 {offsets = [0, 0, 0], sizes = [8, 16, 128], strides = [1, 1, 1]} : vector<8x32x128xf32> to vector<8x16x128xf32>
    %26 = vector.extract_strided_slice %24 {offsets = [0, 16, 0], sizes = [8, 16, 128], strides = [1, 1, 1]} : vector<8x32x128xf32> to vector<8x16x128xf32>
    %27 = arith.maximumf %25, %26 : vector<8x16x128xf32>
    %28 = vector.shape_cast %27 : vector<8x16x128xf32> to vector<128x128xf32>
    %c0_14 = arith.constant 0 : index
    %c0_15 = arith.constant 0 : index
    %29 = vector.load %arg5[%c0_14, %c0_15] : memref<192x128xf32, #tpu.memory_space<vmem>>, vector<192x128xf32>
    %cst_16 = arith.constant dense<0.000000e+00> : vector<192x128xf32>
    %30 = tpu.matmul %29, %28, %cst_16 {dimension_numbers = #tpu.dot_dimension_numbers<[1], [0], [0], [1], [0, 0, 1, 1], [], []>} : vector<192x128xf32>, vector<128x128xf32>, vector<192x128xf32> -> vector<192x128xf32>
    %31 = vector.extract_strided_slice %1 {offsets = [0, 3], sizes = [192, 1], strides = [1, 1]} : vector<256x8xf32> to vector<192x1xf32>
    %32 = vector.broadcast %31 : vector<192x1xf32> to vector<192x128xf32>
    %33 = arith.addf %30, %32 : vector<192x128xf32>
    %c0_17 = arith.constant 0 : index
    %c0_18 = arith.constant 0 : index
    %34 = vector.load %arg6[%c0_17, %c0_18] : memref<192x128xf32, #tpu.memory_space<vmem>>, vector<192x128xf32>
    %cst_19 = arith.constant dense<0.000000e+00> : vector<192x128xf32>
    %35 = tpu.matmul %34, %28, %cst_19 {dimension_numbers = #tpu.dot_dimension_numbers<[1], [0], [0], [1], [0, 0, 1, 1], [], []>} : vector<192x128xf32>, vector<128x128xf32>, vector<192x128xf32> -> vector<192x128xf32>
    %36 = vector.extract_strided_slice %1 {offsets = [0, 4], sizes = [192, 1], strides = [1, 1]} : vector<256x8xf32> to vector<192x1xf32>
    %37 = vector.broadcast %36 : vector<192x1xf32> to vector<192x128xf32>
    %38 = arith.addf %35, %37 : vector<192x128xf32>
    %cst_20 = arith.constant 0.000000e+00 : f32
    %39 = vector.broadcast %cst_20 : f32 to vector<192x128xf32>
    %40 = arith.maximumf %38, %39 : vector<192x128xf32>
    %c0_21 = arith.constant 0 : index
    %c0_22 = arith.constant 0 : index
    %41 = vector.load %arg7[%c0_21, %c0_22] : memref<192x192xf32, #tpu.memory_space<vmem>>, vector<192x192xf32>
    %cst_23 = arith.constant dense<0.000000e+00> : vector<192x128xf32>
    %42 = tpu.matmul %41, %40, %cst_23 {dimension_numbers = #tpu.dot_dimension_numbers<[1], [0], [0], [1], [0, 0, 1, 1], [], []>} : vector<192x192xf32>, vector<192x128xf32>, vector<192x128xf32> -> vector<192x128xf32>
    %43 = vector.extract_strided_slice %1 {offsets = [0, 5], sizes = [192, 1], strides = [1, 1]} : vector<256x8xf32> to vector<192x1xf32>
    %44 = vector.broadcast %43 : vector<192x1xf32> to vector<192x128xf32>
    %45 = arith.addf %42, %44 : vector<192x128xf32>
    %46 = arith.addf %45, %33 : vector<192x128xf32>
    %cst_24 = arith.constant 0.000000e+00 : f32
    %47 = vector.broadcast %cst_24 : f32 to vector<192x128xf32>
    %48 = arith.maximumf %46, %47 : vector<192x128xf32>
    %49 = vector.shape_cast %48 : vector<192x128xf32> to vector<4x48x128xf32>
    %50 = vector.extract_strided_slice %49 {offsets = [0, 0, 0], sizes = [4, 24, 128], strides = [1, 1, 1]} : vector<4x48x128xf32> to vector<4x24x128xf32>
    %51 = vector.extract_strided_slice %49 {offsets = [0, 24, 0], sizes = [4, 24, 128], strides = [1, 1, 1]} : vector<4x48x128xf32> to vector<4x24x128xf32>
    %52 = arith.maximumf %50, %51 : vector<4x24x128xf32>
    %53 = vector.shape_cast %52 : vector<4x24x128xf32> to vector<96x128xf32>
    %c0_25 = arith.constant 0 : index
    %c0_26 = arith.constant 0 : index
    %54 = vector.load %arg8[%c0_25, %c0_26] : memref<4x96xf32, #tpu.memory_space<vmem>>, vector<4x96xf32>
    %cst_27 = arith.constant dense<0.000000e+00> : vector<4x128xf32>
    %55 = tpu.matmul %54, %53, %cst_27 {dimension_numbers = #tpu.dot_dimension_numbers<[1], [0], [0], [1], [0, 0, 1, 1], [], []>} : vector<4x96xf32>, vector<96x128xf32>, vector<4x128xf32> -> vector<4x128xf32>
    %56 = vector.extract_strided_slice %1 {offsets = [0, 6], sizes = [4, 1], strides = [1, 1]} : vector<256x8xf32> to vector<4x1xf32>
    %57 = vector.broadcast %56 : vector<4x1xf32> to vector<4x128xf32>
    %58 = arith.addf %55, %57 : vector<4x128xf32>
    %cst_28 = arith.constant dense<0xFF800000> : vector<128xf32>
    %59 = vector.multi_reduction <maximumf>, %58, %cst_28 [0] : vector<4x128xf32> to vector<128xf32>
    %60 = vector.shape_cast %59 : vector<128xf32> to vector<1x128xf32>
    %61 = vector.broadcast %60 : vector<1x128xf32> to vector<4x128xf32>
    %62 = arith.subf %58, %61 : vector<4x128xf32>
    %63 = math.exp %62 : vector<4x128xf32>
    %cst_29 = arith.constant dense<0.000000e+00> : vector<128xf32>
    %64 = vector.multi_reduction <add>, %63, %cst_29 [0] : vector<4x128xf32> to vector<128xf32>
    %65 = vector.shape_cast %64 : vector<128xf32> to vector<1x128xf32>
    %66 = tpu.reciprocal %65 {approx = true} : vector<1x128xf32> -> vector<1x128xf32>
    %67 = vector.broadcast %66 : vector<1x128xf32> to vector<4x128xf32>
    %68 = arith.mulf %63, %67 : vector<4x128xf32>
    %c0_30 = arith.constant 0 : index
    %c0_31 = arith.constant 0 : index
    %69 = vector.load %arg10[%c0_30, %c0_31] : memref<4x128xf32, #tpu.memory_space<vmem>>, vector<4x128xf32>
    tpu.vector_store %arg10[%c0_30, %c0_31], %68 {strides = array<i32>} : memref<4x128xf32, #tpu.memory_space<vmem>>, vector<4x128xf32>,
    return
  }
  func.func @transform_0(%arg0: i32) -> (i32, i32) {
    %c0_i32 = arith.constant 0 : i32
    %c0_i32_0 = arith.constant 0 : i32
    return %c0_i32, %arg0 : i32, i32
  }
  func.func @transform_1(%arg0: i32) -> (i32, i32) {
    %c0_i32 = arith.constant 0 : i32
    %c0_i32_0 = arith.constant 0 : i32
    %c0_i32_1 = arith.constant 0 : i32
    return %c0_i32, %c0_i32_0 : i32, i32
  }
  func.func @transform_2(%arg0: i32) -> (i32, i32) {
    %c0_i32 = arith.constant 0 : i32
    %c0_i32_0 = arith.constant 0 : i32
    %c0_i32_1 = arith.constant 0 : i32
    return %c0_i32, %c0_i32_0 : i32, i32
  }
  func.func @transform_3(%arg0: i32) -> (i32, i32) {
    %c0_i32 = arith.constant 0 : i32
    %c0_i32_0 = arith.constant 0 : i32
    %c0_i32_1 = arith.constant 0 : i32
    return %c0_i32, %c0_i32_0 : i32, i32
  }
  func.func @transform_4(%arg0: i32) -> (i32, i32) {
    %c0_i32 = arith.constant 0 : i32
    %c0_i32_0 = arith.constant 0 : i32
    %c0_i32_1 = arith.constant 0 : i32
    return %c0_i32, %c0_i32_0 : i32, i32
  }
  func.func @transform_5(%arg0: i32) -> (i32, i32) {
    %c0_i32 = arith.constant 0 : i32
    %c0_i32_0 = arith.constant 0 : i32
    %c0_i32_1 = arith.constant 0 : i32
    return %c0_i32, %c0_i32_0 : i32, i32
  }
  func.func @transform_6(%arg0: i32) -> (i32, i32) {
    %c0_i32 = arith.constant 0 : i32
    %c0_i32_0 = arith.constant 0 : i32
    %c0_i32_1 = arith.constant 0 : i32
    return %c0_i32, %c0_i32_0 : i32, i32
  }
  func.func @transform_7(%arg0: i32) -> (i32, i32) {
    %c0_i32 = arith.constant 0 : i32
    %c0_i32_0 = arith.constant 0 : i32
    %c0_i32_1 = arith.constant 0 : i32
    return %c0_i32, %c0_i32_0 : i32, i32
  }
  func.func @transform_8(%arg0: i32) -> (i32, i32) {
    %c0_i32 = arith.constant 0 : i32
    %c0_i32_0 = arith.constant 0 : i32
    %c0_i32_1 = arith.constant 0 : i32
    return %c0_i32, %c0_i32_0 : i32, i32
  }
  func.func @transform_9(%arg0: i32) -> (i32, i32) {
    %c0_i32 = arith.constant 0 : i32
    %c0_i32_0 = arith.constant 0 : i32
    return %c0_i32, %arg0 : i32, i32
  }
}

</mosaic_0001>

<llo_original>
// kernel: tpu_custom_call.1
$region0: #{tpu_custom_call.1}
  #allocation0 [shape = 'u32[]', space=smem, size = 0x4, offset = 0x4, fixed_abs, tag = 'smem constant byte address 0x4 - core index']
  #allocation1 [shape = 'u32[144,128]{1,0:T(1,128)}', space=vmem, size = 0x12000, scoped, tag = 'internal scratch']
  %s0 = inlined_call_operand.vmem [shape: f32[16,128], index: 0, kind: input, shape index: {}]
  %s1 = inlined_call_operand.vmem [shape: f32[256,16], index: 1, kind: input, shape index: {}]
  %s2 = inlined_call_operand.vmem [shape: f32[256,256], index: 2, kind: input, shape index: {}]
  %s3 = inlined_call_operand.hbm [shape: f32[256,256], index: 3, kind: input, shape index: {}]
  %s4 = inlined_call_operand.hbm [shape: f32[192,128], index: 4, kind: input, shape index: {}]
  %s5 = inlined_call_operand.hbm [shape: f32[192,128], index: 5, kind: input, shape index: {}]
  %s6 = inlined_call_operand.hbm [shape: f32[192,192], index: 6, kind: input, shape index: {}]
  %s7 = inlined_call_operand.vmem [shape: f32[4,96], index: 7, kind: input, shape index: {}]
  %s8 = inlined_call_operand.vmem [shape: f32[256,8], index: 8, kind: input, shape index: {}]
  %s9 = inlined_call_operand.hbm [shape: f32[4,128], index: 9, kind: output, shape index: {}]
  %s10 = sld [smem:[#allocation0]]
  $region62: #{tpu_custom_call.1} parent=0
    _
  %s12 = ssub.s32 1, %s10
  %s13 = scalar_select 0, %s12, %s10
  $region1: #{tpu_custom_call.1} parent=0
    #allocation2 [shape = 'u8[262144]{0}', space=vmem, size = 0x40000, scoped, tag = 'input window, operand 3, single buffered']
    #allocation3 [shape = 's32[1]{0}', space=sflag, size = 0x4, scoped, tag = 'scoped memory for tpu_custom_call.1']
    #allocation4 [shape = 's32[1]{0}', space=sflag, size = 0x4, scoped, tag = 'scoped memory for tpu_custom_call.1']
    #allocation5 [shape = 'u8[98304]{0}', space=vmem, size = 0x18000, scoped, tag = 'input window, operand 4, single buffered']
    #allocation6 [shape = 's32[1]{0}', space=sflag, size = 0x4, scoped, tag = 'scoped memory for tpu_custom_call.1']
    #allocation7 [shape = 'u8[98304]{0}', space=vmem, size = 0x18000, scoped, tag = 'input window, operand 5, single buffered']
    #allocation8 [shape = 'u8[196608]{0}', space=vmem, size = 0x30000, scoped, tag = 'input window, operand 6, single buffered']
    #allocation9 [shape = 's32[1]{0}', space=sflag, size = 0x4, scoped, tag = 'scoped memory for tpu_custom_call.1']
    #allocation10 [shape = 'u8[2048]{0}', space=vmem, size = 0x800, scoped, tag = 'output window, operand 0, single buffered']
    %14 = vsyncpa [#allocation3], 0
    %15 = vsyncpa [#allocation6], 0
    %16 = vsyncpa [#allocation9], 0
    %17 = vsyncpa [#allocation4], 0
    // Predicated region
    $region2: #{tpu_custom_call.1} parent=1 // pred_check
      _
    $region3: #{tpu_custom_call.1} parent=1 // pred_check_branch
      %19 = sbr.rel (0) target = $region5
    $region4: #{tpu_custom_call.1} parent=1 // pred_region
      _
    $region5: #{tpu_custom_call.1} parent=1 // pred_fallthru
      _
    // Predicated region
    $region6: #{tpu_custom_call.1} parent=1 // pred_check
      _
    $region7: #{tpu_custom_call.1} parent=1 // pred_check_branch
      %21 = sbr.rel (0) target = $region9
    $region8: #{tpu_custom_call.1} parent=1 // pred_region
      _
    $region9: #{tpu_custom_call.1} parent=1 // pred_fallthru
      _
    // Predicated region
    $region10: #{tpu_custom_call.1} parent=1 // pred_check
      _
    $region11: #{tpu_custom_call.1} parent=1 // pred_check_branch
      %23 = sbr.rel (0) target = $region13
    $region12: #{tpu_custom_call.1} parent=1 // pred_region
      _
    $region13: #{tpu_custom_call.1} parent=1 // pred_fallthru
      _
    // Predicated region
    $region14: #{tpu_custom_call.1} parent=1 // pred_check
      _
    $region15: #{tpu_custom_call.1} parent=1 // pred_check_branch
      %25 = sbr.rel (0) target = $region17
    $region16: #{tpu_custom_call.1} parent=1 // pred_region
      %s27 = ssub.s32 8192, 8192
      %28 = vsyncadd [#allocation3], %s27
      %s29 = sshll.u32 [#allocation2], 4
      %s30 = int_to_ptr.vmem [resolvable:$true] %s29
      %35 = dma.hbm_to_vmem [thread:$0]  %s3, 8192, %s30, [#allocation3], 256, 256, 16
    $region17: #{tpu_custom_call.1} parent=1 // pred_fallthru
      _
    // Predicated region
    $region18: #{tpu_custom_call.1} parent=1 // pred_check
      _
    $region19: #{tpu_custom_call.1} parent=1 // pred_check_branch
      %37 = sbr.rel (0) target = $region21
    $region20: #{tpu_custom_call.1} parent=1 // pred_region
      %s39 = ssub.s32 3072, 3072
      %40 = vsyncadd [#allocation6], %s39
      %s41 = sshll.u32 [#allocation5], 4
      %s42 = int_to_ptr.vmem [resolvable:$true] %s41
      %47 = dma.hbm_to_vmem [thread:$0]  %s4, 3072, %s42, [#allocation6], 128, 128, 8
    $region21: #{tpu_custom_call.1} parent=1 // pred_fallthru
      _
    // Predicated region
    $region22: #{tpu_custom_call.1} parent=1 // pred_check
      _
    $region23: #{tpu_custom_call.1} parent=1 // pred_check_branch
      %49 = sbr.rel (0) target = $region25
    $region24: #{tpu_custom_call.1} parent=1 // pred_region
      %s51 = ssub.s32 3072, 3072
      %52 = vsyncadd [#allocation6], %s51
      %s53 = sshll.u32 [#allocation7], 4
      %s54 = int_to_ptr.vmem [resolvable:$true] %s53
      %59 = dma.hbm_to_vmem [thread:$0]  %s5, 3072, %s54, [#allocation6], 128, 128, 8
    $region25: #{tpu_custom_call.1} parent=1 // pred_fallthru
      _
    // Predicated region
    $region26: #{tpu_custom_call.1} parent=1 // pred_check
      _
    $region27: #{tpu_custom_call.1} parent=1 // pred_check_branch
      %61 = sbr.rel (0) target = $region29
    $region28: #{tpu_custom_call.1} parent=1 // pred_region
      %s63 = ssub.s32 6144, 6144
      %64 = vsyncadd [#allocation9], %s63
      %s65 = sshll.u32 [#allocation8], 4
      %s66 = int_to_ptr.vmem [resolvable:$true] %s65
      %71 = dma.hbm_to_vmem [thread:$0]  %s6, 6144, %s66, [#allocation9], 256, 256, 16
    $region29: #{tpu_custom_call.1} parent=1 // pred_fallthru
      _
    // Predicated region
    $region30: #{tpu_custom_call.1} parent=1 // pred_check
      _
    $region31: #{tpu_custom_call.1} parent=1 // pred_check_branch
      %73 = sbr.rel (0) target = $region33
    $region32: #{tpu_custom_call.1} parent=1 // pred_region
      _
    $region33: #{tpu_custom_call.1} parent=1 // pred_fallthru
      _
    // Predicated region
    $region34: #{tpu_custom_call.1} parent=1 // pred_check
      _
    $region35: #{tpu_custom_call.1} parent=1 // pred_check_branch
      %75 = sbr.rel (0) target = $region37
    $region36: #{tpu_custom_call.1} parent=1 // pred_region
      _
    $region37: #{tpu_custom_call.1} parent=1 // pred_fallthru
      _
    // Predicated region
    $region38: #{tpu_custom_call.1} parent=1 // pred_check
      _
    $region39: #{tpu_custom_call.1} parent=1 // pred_check_branch
      %77 = sbr.rel (0) target = $region41
    $region40: #{tpu_custom_call.1} parent=1 // pred_region
      %78 = dma.done [#allocation3], 8192
    $region41: #{tpu_custom_call.1} parent=1 // pred_fallthru
      _
    // Predicated region
    $region42: #{tpu_custom_call.1} parent=1 // pred_check
      _
    $region43: #{tpu_custom_call.1} parent=1 // pred_check_branch
      %80 = sbr.rel (0) target = $region45
    $region44: #{tpu_custom_call.1} parent=1 // pred_region
      %81 = dma.done [#allocation6], 3072
    $region45: #{tpu_custom_call.1} parent=1 // pred_fallthru
      _
    // Predicated region
    $region46: #{tpu_custom_call.1} parent=1 // pred_check
      _
    $region47: #{tpu_custom_call.1} parent=1 // pred_check_branch
      %83 = sbr.rel (0) target = $region49
    $region48: #{tpu_custom_call.1} parent=1 // pred_region
      %84 = dma.done [#allocation6], 3072
    $region49: #{tpu_custom_call.1} parent=1 // pred_fallthru
      _
    // Predicated region
    $region50: #{tpu_custom_call.1} parent=1 // pred_check
      _
    $region51: #{tpu_custom_call.1} parent=1 // pred_check_branch
      %86 = sbr.rel (0) target = $region53
    $region52: #{tpu_custom_call.1} parent=1 // pred_region
      %87 = dma.done [#allocation9], 6144
    $region53: #{tpu_custom_call.1} parent=1 // pred_fallthru
      _
    %v88 = vld [vmem:[%s0] sm:$0xff]
    %v89 = vld [vmem:[%s0 + $0x8] sm:$0xff]
    %v90 = vld [vmem:[%s8] sm:$0xff]
    %v91 = vld [vmem:[%s8 + $0x8] sm:$0xff]
    %v92 = vld [vmem:[%s8 + $0x10] sm:$0xff]
    %v93 = vld [vmem:[%s8 + $0x18] sm:$0xff]
    %v94 = vld [vmem:[%s8 + $0x20] sm:$0xff]
    %v95 = vld [vmem:[%s8 + $0x28] sm:$0xff]
    %v96 = vld [vmem:[%s8 + $0x30] sm:$0xff]
    %v97 = vld [vmem:[%s8 + $0x38] sm:$0xff]
    %v98 = vld [vmem:[%s8 + $0x40] sm:$0xff]
    %v99 = vld [vmem:[%s8 + $0x48] sm:$0xff]
    %v100 = vld [vmem:[%s8 + $0x50] sm:$0xff]
    %v101 = vld [vmem:[%s8 + $0x58] sm:$0xff]
    %v102 = vld [vmem:[%s8 + $0x60] sm:$0xff]
    %v103 = vld [vmem:[%s8 + $0x68] sm:$0xff]
    %v104 = vld [vmem:[%s8 + $0x70] sm:$0xff]
    %v105 = vld [vmem:[%s8 + $0x78] sm:$0xff]
    %v106 = vld [vmem:[%s8 + $0x80] sm:$0xff]
    %v107 = vld [vmem:[%s8 + $0x88] sm:$0xff]
    %v108 = vld [vmem:[%s8 + $0x90] sm:$0xff]
    %v109 = vld [vmem:[%s8 + $0x98] sm:$0xff]
    %v110 = vld [vmem:[%s8 + $0xa0] sm:$0xff]
    %v111 = vld [vmem:[%s8 + $0xa8] sm:$0xff]
    %v112 = vld [vmem:[%s8 + $0xb0] sm:$0xff]
    %v113 = vld [vmem:[%s8 + $0xb8] sm:$0xff]
    %v114 = vld [vmem:[%s8 + $0xc0] sm:$0xff]
    %v115 = vld [vmem:[%s8 + $0xc8] sm:$0xff]
    %v116 = vld [vmem:[%s8 + $0xd0] sm:$0xff]
    %v117 = vld [vmem:[%s8 + $0xd8] sm:$0xff]
    %v118 = vld [vmem:[%s8 + $0xe0] sm:$0xff]
    %v119 = vld [vmem:[%s8 + $0xe8] sm:$0xff]
    %v120 = vld [vmem:[%s8 + $0xf0] sm:$0xff]
    %v121 = vld [vmem:[%s8 + $0xf8] sm:$0xff]
    %v122 = vld [vmem:[%s1] sm:$0xff]
    %v123 = vld [vmem:[%s1 + $0x8] sm:$0xff]
    %v124 = vld [vmem:[%s1 + $0x10] sm:$0xff]
    %v125 = vld [vmem:[%s1 + $0x18] sm:$0xff]
    %v126 = vld [vmem:[%s1 + $0x20] sm:$0xff]
    %v127 = vld [vmem:[%s1 + $0x28] sm:$0xff]
    %v128 = vld [vmem:[%s1 + $0x30] sm:$0xff]
    %v129 = vld [vmem:[%s1 + $0x38] sm:$0xff]
    %v130 = vld [vmem:[%s1 + $0x40] sm:$0xff]
    %v131 = vld [vmem:[%s1 + $0x48] sm:$0xff]
    %v132 = vld [vmem:[%s1 + $0x50] sm:$0xff]
    %v133 = vld [vmem:[%s1 + $0x58] sm:$0xff]
    %v134 = vld [vmem:[%s1 + $0x60] sm:$0xff]
    %v135 = vld [vmem:[%s1 + $0x68] sm:$0xff]
    %v136 = vld [vmem:[%s1 + $0x70] sm:$0xff]
    %v137 = vld [vmem:[%s1 + $0x78] sm:$0xff]
    %v138 = vld [vmem:[%s1 + $0x80] sm:$0xff]
    %v139 = vld [vmem:[%s1 + $0x88] sm:$0xff]
    %v140 = vld [vmem:[%s1 + $0x90] sm:$0xff]
    %v141 = vld [vmem:[%s1 + $0x98] sm:$0xff]
    %v142 = vld [vmem:[%s1 + $0xa0] sm:$0xff]
    %v143 = vld [vmem:[%s1 + $0xa8] sm:$0xff]
    %v144 = vld [vmem:[%s1 + $0xb0] sm:$0xff]
    %v145 = vld [vmem:[%s1 + $0xb8] sm:$0xff]
    %v146 = vld [vmem:[%s1 + $0xc0] sm:$0xff]
    %v147 = vld [vmem:[%s1 + $0xc8] sm:$0xff]
    %v148 = vld [vmem:[%s1 + $0xd0] sm:$0xff]
    %v149 = vld [vmem:[%s1 + $0xd8] sm:$0xff]
    %v150 = vld [vmem:[%s1 + $0xe0] sm:$0xff]
    %v151 = vld [vmem:[%s1 + $0xe8] sm:$0xff]
    %v152 = vld [vmem:[%s1 + $0xf0] sm:$0xff]
    %v153 = vld [vmem:[%s1 + $0xf8] sm:$0xff]
    %155 = vset.pattern.permute.xlu0 0
    %156 = vperm.xlu0 %155, %v90
    %v157 = vpop.permute.xlu0 %156
    %160 = vset.pattern.permute.xlu0 0
    %161 = vperm.xlu0 %160, %v91
    %v162 = vpop.permute.xlu0 %161
    %165 = vset.pattern.permute.xlu0 0
    %166 = vperm.xlu0 %165, %v92
    %v167 = vpop.permute.xlu0 %166
    %170 = vset.pattern.permute.xlu0 0
    %171 = vperm.xlu0 %170, %v93
    %v172 = vpop.permute.xlu0 %171
    %175 = vset.pattern.permute.xlu0 0
    %176 = vperm.xlu0 %175, %v94
    %v177 = vpop.permute.xlu0 %176
    %180 = vset.pattern.permute.xlu0 0
    %181 = vperm.xlu0 %180, %v95
    %v182 = vpop.permute.xlu0 %181
    %185 = vset.pattern.permute.xlu0 0
    %186 = vperm.xlu0 %185, %v96
    %v187 = vpop.permute.xlu0 %186
    %190 = vset.pattern.permute.xlu0 0
    %191 = vperm.xlu0 %190, %v97
    %v192 = vpop.permute.xlu0 %191
    %195 = vset.pattern.permute.xlu0 0
    %196 = vperm.xlu0 %195, %v98
    %v197 = vpop.permute.xlu0 %196
    %200 = vset.pattern.permute.xlu0 0
    %201 = vperm.xlu0 %200, %v99
    %v202 = vpop.permute.xlu0 %201
    %205 = vset.pattern.permute.xlu0 0
    %206 = vperm.xlu0 %205, %v100
    %v207 = vpop.permute.xlu0 %206
    %210 = vset.pattern.permute.xlu0 0
    %211 = vperm.xlu0 %210, %v101
    %v212 = vpop.permute.xlu0 %211
    %215 = vset.pattern.permute.xlu0 0
    %216 = vperm.xlu0 %215, %v102
    %v217 = vpop.permute.xlu0 %216
    %220 = vset.pattern.permute.xlu0 0
    %221 = vperm.xlu0 %220, %v103
    %v222 = vpop.permute.xlu0 %221
    %225 = vset.pattern.permute.xlu0 0
    %226 = vperm.xlu0 %225, %v104
    %v227 = vpop.permute.xlu0 %226
    %230 = vset.pattern.permute.xlu0 0
    %231 = vperm.xlu0 %230, %v105
    %v232 = vpop.permute.xlu0 %231
    %235 = vset.pattern.permute.xlu0 0
    %236 = vperm.xlu0 %235, %v106
    %v237 = vpop.permute.xlu0 %236
    %240 = vset.pattern.permute.xlu0 0
    %241 = vperm.xlu0 %240, %v107
    %v242 = vpop.permute.xlu0 %241
    %245 = vset.pattern.permute.xlu0 0
    %246 = vperm.xlu0 %245, %v108
    %v247 = vpop.permute.xlu0 %246
    %250 = vset.pattern.permute.xlu0 0
    %251 = vperm.xlu0 %250, %v109
    %v252 = vpop.permute.xlu0 %251
    %255 = vset.pattern.permute.xlu0 0
    %256 = vperm.xlu0 %255, %v110
    %v257 = vpop.permute.xlu0 %256
    %260 = vset.pattern.permute.xlu0 0
    %261 = vperm.xlu0 %260, %v111
    %v262 = vpop.permute.xlu0 %261
    %265 = vset.pattern.permute.xlu0 0
    %266 = vperm.xlu0 %265, %v112
    %v267 = vpop.permute.xlu0 %266
    %270 = vset.pattern.permute.xlu0 0
    %271 = vperm.xlu0 %270, %v113
    %v272 = vpop.permute.xlu0 %271
    %275 = vset.pattern.permute.xlu0 0
    %276 = vperm.xlu0 %275, %v114
    %v277 = vpop.permute.xlu0 %276
    %280 = vset.pattern.permute.xlu0 0
    %281 = vperm.xlu0 %280, %v115
    %v282 = vpop.permute.xlu0 %281
    %285 = vset.pattern.permute.xlu0 0
    %286 = vperm.xlu0 %285, %v116
    %v287 = vpop.permute.xlu0 %286
    %290 = vset.pattern.permute.xlu0 0
    %291 = vperm.xlu0 %290, %v117
    %v292 = vpop.permute.xlu0 %291
    %295 = vset.pattern.permute.xlu0 0
    %296 = vperm.xlu0 %295, %v118
    %v297 = vpop.permute.xlu0 %296
    %300 = vset.pattern.permute.xlu0 0
    %301 = vperm.xlu0 %300, %v119
    %v302 = vpop.permute.xlu0 %301
    %305 = vset.pattern.permute.xlu0 0
    %306 = vperm.xlu0 %305, %v120
    %v307 = vpop.permute.xlu0 %306
    %310 = vset.pattern.permute.xlu0 0
    %311 = vperm.xlu0 %310, %v121
    %v312 = vpop.permute.xlu0 %311
    %vm314 = vcmask 130048
    %v316 = vsel %vm314, %v122, 0
    %v319 = vsel %vm314, %v123, 0
    %v322 = vsel %vm314, %v124, 0
    %v325 = vsel %vm314, %v125, 0
    %v328 = vsel %vm314, %v126, 0
    %v331 = vsel %vm314, %v127, 0
    %v334 = vsel %vm314, %v128, 0
    %v337 = vsel %vm314, %v129, 0
    %v340 = vsel %vm314, %v130, 0
    %v343 = vsel %vm314, %v131, 0
    %v346 = vsel %vm314, %v132, 0
    %v349 = vsel %vm314, %v133, 0
    %v352 = vsel %vm314, %v134, 0
    %v355 = vsel %vm314, %v135, 0
    %v358 = vsel %vm314, %v136, 0
    %v361 = vsel %vm314, %v137, 0
    %v364 = vsel %vm314, %v138, 0
    %v367 = vsel %vm314, %v139, 0
    %v370 = vsel %vm314, %v140, 0
    %v373 = vsel %vm314, %v141, 0
    %v376 = vsel %vm314, %v142, 0
    %v379 = vsel %vm314, %v143, 0
    %v382 = vsel %vm314, %v144, 0
    %v385 = vsel %vm314, %v145, 0
    %v388 = vsel %vm314, %v146, 0
    %v391 = vsel %vm314, %v147, 0
    %v394 = vsel %vm314, %v148, 0
    %v397 = vsel %vm314, %v149, 0
    %v400 = vsel %vm314, %v150, 0
    %v403 = vsel %vm314, %v151, 0
    %v406 = vsel %vm314, %v152, 0
    %v409 = vsel %vm314, %v153, 0
    %411 = vmatprep.subr.mxu0 0.0
    %412 = vmatpush1.msra.mxu0 %v88
    %413 = vmatprep.subr.mxu0 0.0
    %414 = vmatpush1.msra.mxu0 %v89
    %415 = vmatprep.subr.mxu0 0.0
    %416 = vmatpush1.msra.mxu0 0.0
    %417 = vmatprep.subr.mxu0 0.0
    %418 = vmatpush1.msra.mxu0 0.0
    %419 = vmatprep.subr.mxu0 0.0
    %420 = vmatpush1.msra.mxu0 0.0
    %421 = vmatprep.subr.mxu0 0.0
    %422 = vmatpush1.msra.mxu0 0.0
    %423 = vmatprep.subr.mxu0 0.0
    %424 = vmatpush1.msra.mxu0 0.0
    %425 = vmatprep.subr.mxu0 0.0
    %426 = vmatpush1.msra.mxu0 0.0
    %427 = vmatprep.subr.mxu0 0.0
    %428 = vmatpush1.msra.mxu0 0.0
    %429 = vmatprep.subr.mxu0 0.0
    %430 = vmatpush1.msra.mxu0 0.0
    %431 = vmatprep.subr.mxu0 0.0
    %432 = vmatpush1.msra.mxu0 0.0
    %433 = vmatprep.subr.mxu0 0.0
    %434 = vmatpush1.msra.mxu0 0.0
    %435 = vmatprep.subr.mxu0 0.0
    %436 = vmatpush1.msra.mxu0 0.0
    %437 = vmatprep.subr.mxu0 0.0
    %438 = vmatpush1.msra.mxu0 0.0
    %439 = vmatprep.subr.mxu0 0.0
    %440 = vmatpush1.msra.mxu0 0.0
    %441 = vmatprep.subr.mxu0 0.0
    %442 = vmatpush1.msra.mxu0 0.0
    %443 = vmatprep.subr.mxu0 0.0
    %444 = vmatpush1.msra.mxu0 0.0
    %445 = vmatprep.subr.mxu0 0.0
    %446 = vmatpush1.msra.mxu0 0.0
    %447 = vmatprep.subr.mxu0 0.0
    %448 = vmatpush1.msra.mxu0 0.0
    %449 = vmatprep.subr.mxu0 0.0
    %450 = vmatpush1.msra.mxu0 0.0
    %451 = vmatprep.subr.mxu0 0.0
    %452 = vmatpush1.msra.mxu0 0.0
    %453 = vmatprep.subr.mxu0 0.0
    %454 = vmatpush1.msra.mxu0 0.0
    %455 = vmatprep.subr.mxu0 0.0
    %456 = vmatpush1.msra.mxu0 0.0
    %457 = vmatprep.subr.mxu0 0.0
    %458 = vmatpush1.msra.mxu0 0.0
    %459 = vmatprep.subr.mxu0 0.0
    %460 = vmatpush1.msra.mxu0 0.0
    %461 = vmatprep.subr.mxu0 0.0
    %462 = vmatpush1.msra.mxu0 0.0
    %463 = vmatprep.subr.mxu0 0.0
    %464 = vmatpush1.msra.mxu0 0.0
    %465 = vmatprep.subr.mxu0 0.0
    %466 = vmatpush1.msra.mxu0 0.0
    %467 = vmatprep.subr.mxu0 0.0
    %468 = vmatpush1.msra.mxu0 0.0
    %469 = vmatprep.subr.mxu0 0.0
    %470 = vmatpush1.msra.mxu0 0.0
    %471 = vmatprep.subr.mxu0 0.0
    %472 = vmatpush1.msra.mxu0 0.0
    %473 = vmatprep.subr.mxu0 0.0
    %474 = vmatpush1.msra.mxu0 0.0
    %475 = vmatprep.mubr.f32.mxu0 0.0
    %476 = vmatmul.mubr.f32.gmra.mrb[0].mxu0 %v316
    %v477 = vpop.f32.mrb[0].mxu0
    %v478 = vadd.f32 %v157, %v477
    %v479 = vpop.f32.mrb[0].mxu0
    %480 = vmatprep.mubr.f32.mxu0 0.0
    %481 = vmatmul.mubr.f32.gmra.mrb[0].mxu0 %v319
    %v482 = vpop.f32.mrb[0].mxu0
    %v483 = vadd.f32 %v162, %v482
    %v484 = vpop.f32.mrb[0].mxu0
    %485 = vmatprep.mubr.f32.mxu0 0.0
    %486 = vmatmul.mubr.f32.gmra.mrb[0].mxu0 %v322
    %v487 = vpop.f32.mrb[0].mxu0
    %v488 = vadd.f32 %v167, %v487
    %v489 = vpop.f32.mrb[0].mxu0
    %490 = vmatprep.mubr.f32.mxu0 0.0
    %491 = vmatmul.mubr.f32.gmra.mrb[0].mxu0 %v325
    %v492 = vpop.f32.mrb[0].mxu0
    %v493 = vadd.f32 %v172, %v492
    %v494 = vpop.f32.mrb[0].mxu0
    %495 = vmatprep.mubr.f32.mxu0 0.0
    %496 = vmatmul.mubr.f32.gmra.mrb[0].mxu0 %v328
    %v497 = vpop.f32.mrb[0].mxu0
    %v498 = vadd.f32 %v177, %v497
    %v499 = vpop.f32.mrb[0].mxu0
    %500 = vmatprep.mubr.f32.mxu0 0.0
    %501 = vmatmul.mubr.f32.gmra.mrb[0].mxu0 %v331
    %v502 = vpop.f32.mrb[0].mxu0
    %v503 = vadd.f32 %v182, %v502
    %v504 = vpop.f32.mrb[0].mxu0
    %505 = vmatprep.mubr.f32.mxu0 0.0
    %506 = vmatmul.mubr.f32.gmra.mrb[0].mxu0 %v334
    %v507 = vpop.f32.mrb[0].mxu0
    %v508 = vadd.f32 %v187, %v507
    %v509 = vpop.f32.mrb[0].mxu0
    %510 = vmatprep.mubr.f32.mxu0 0.0
    %511 = vmatmul.mubr.f32.gmra.mrb[0].mxu0 %v337
    %v512 = vpop.f32.mrb[0].mxu0
    %v513 = vadd.f32 %v192, %v512
    %v514 = vpop.f32.mrb[0].mxu0
    %515 = vmatprep.mubr.f32.mxu0 0.0
    %516 = vmatmul.mubr.f32.gmra.mrb[0].mxu0 %v340
    %v517 = vpop.f32.mrb[0].mxu0
    %v518 = vadd.f32 %v197, %v517
    %v519 = vpop.f32.mrb[0].mxu0
    %520 = vmatprep.mubr.f32.mxu0 0.0
    %521 = vmatmul.mubr.f32.gmra.mrb[0].mxu0 %v343
    %v522 = vpop.f32.mrb[0].mxu0
    %v523 = vadd.f32 %v202, %v522
    %v524 = vpop.f32.mrb[0].mxu0
    %525 = vmatprep.mubr.f32.mxu0 0.0
    %526 = vmatmul.mubr.f32.gmra.mrb[0].mxu0 %v346
    %v527 = vpop.f32.mrb[0].mxu0
    %v528 = vadd.f32 %v207, %v527
    %v529 = vpop.f32.mrb[0].mxu0
    %530 = vmatprep.mubr.f32.mxu0 0.0
    %531 = vmatmul.mubr.f32.gmra.mrb[0].mxu0 %v349
    %v532 = vpop.f32.mrb[0].mxu0
    %v533 = vadd.f32 %v212, %v532
    %v534 = vpop.f32.mrb[0].mxu0
    %535 = vmatprep.mubr.f32.mxu0 0.0
    %536 = vmatmul.mubr.f32.gmra.mrb[0].mxu0 %v352
    %v537 = vpop.f32.mrb[0].mxu0
    %v538 = vadd.f32 %v217, %v537
    %v539 = vpop.f32.mrb[0].mxu0
    %540 = vmatprep.mubr.f32.mxu0 0.0
    %541 = vmatmul.mubr.f32.gmra.mrb[0].mxu0 %v355
    %v542 = vpop.f32.mrb[0].mxu0
    %v543 = vadd.f32 %v222, %v542
    %v544 = vpop.f32.mrb[0].mxu0
    %545 = vmatprep.mubr.f32.mxu0 0.0
    %546 = vmatmul.mubr.f32.gmra.mrb[0].mxu0 %v358
    %v547 = vpop.f32.mrb[0].mxu0
    %v548 = vadd.f32 %v227, %v547
    %v549 = vpop.f32.mrb[0].mxu0
    %550 = vmatprep.mubr.f32.mxu0 0.0
    %551 = vmatmul.mubr.f32.gmra.mrb[0].mxu0 %v361
    %v552 = vpop.f32.mrb[0].mxu0
    %v553 = vadd.f32 %v232, %v552
    %v554 = vpop.f32.mrb[0].mxu0
    %555 = vmatprep.mubr.f32.mxu0 0.0
    %556 = vmatmul.mubr.f32.gmra.mrb[0].mxu0 %v364
    %v557 = vpop.f32.mrb[0].mxu0
    %v558 = vadd.f32 %v237, %v557
    %v559 = vpop.f32.mrb[0].mxu0
    %560 = vmatprep.mubr.f32.mxu0 0.0
    %561 = vmatmul.mubr.f32.gmra.mrb[0].mxu0 %v367
    %v562 = vpop.f32.mrb[0].mxu0
    %v563 = vadd.f32 %v242, %v562
    %v564 = vpop.f32.mrb[0].mxu0
    %565 = vmatprep.mubr.f32.mxu0 0.0
    %566 = vmatmul.mubr.f32.gmra.mrb[0].mxu0 %v370
    %v567 = vpop.f32.mrb[0].mxu0
    %v568 = vadd.f32 %v247, %v567
    %v569 = vpop.f32.mrb[0].mxu0
    %570 = vmatprep.mubr.f32.mxu0 0.0
    %571 = vmatmul.mubr.f32.gmra.mrb[0].mxu0 %v373
    %v572 = vpop.f32.mrb[0].mxu0
    %v573 = vadd.f32 %v252, %v572
    %v574 = vpop.f32.mrb[0].mxu0
    %575 = vmatprep.mubr.f32.mxu0 0.0
    %576 = vmatmul.mubr.f32.gmra.mrb[0].mxu0 %v376
    %v577 = vpop.f32.mrb[0].mxu0
    %v578 = vadd.f32 %v257, %v577
    %v579 = vpop.f32.mrb[0].mxu0
    %580 = vmatprep.mubr.f32.mxu0 0.0
    %581 = vmatmul.mubr.f32.gmra.mrb[0].mxu0 %v379
    %v582 = vpop.f32.mrb[0].mxu0
    %v583 = vadd.f32 %v262, %v582
    %v584 = vpop.f32.mrb[0].mxu0
    %585 = vmatprep.mubr.f32.mxu0 0.0
    %586 = vmatmul.mubr.f32.gmra.mrb[0].mxu0 %v382
    %v587 = vpop.f32.mrb[0].mxu0
    %v588 = vadd.f32 %v267, %v587
    %v589 = vpop.f32.mrb[0].mxu0
    %590 = vmatprep.mubr.f32.mxu0 0.0
    %591 = vmatmul.mubr.f32.gmra.mrb[0].mxu0 %v385
    %v592 = vpop.f32.mrb[0].mxu0
    %v593 = vadd.f32 %v272, %v592
    %v594 = vpop.f32.mrb[0].mxu0
    %595 = vmatprep.mubr.f32.mxu0 0.0
    %596 = vmatmul.mubr.f32.gmra.mrb[0].mxu0 %v388
    %v597 = vpop.f32.mrb[0].mxu0
    %v598 = vadd.f32 %v277, %v597
    %v599 = vpop.f32.mrb[0].mxu0
    %600 = vmatprep.mubr.f32.mxu0 0.0
    %601 = vmatmul.mubr.f32.gmra.mrb[0].mxu0 %v391
    %v602 = vpop.f32.mrb[0].mxu0
    %v603 = vadd.f32 %v282, %v602
    %v604 = vpop.f32.mrb[0].mxu0
    %605 = vmatprep.mubr.f32.mxu0 0.0
    %606 = vmatmul.mubr.f32.gmra.mrb[0].mxu0 %v394
    %v607 = vpop.f32.mrb[0].mxu0
    %v608 = vadd.f32 %v287, %v607
    %v609 = vpop.f32.mrb[0].mxu0
    %610 = vmatprep.mubr.f32.mxu0 0.0
    %611 = vmatmul.mubr.f32.gmra.mrb[0].mxu0 %v397
    %v612 = vpop.f32.mrb[0].mxu0
    %v613 = vadd.f32 %v292, %v612
    %v614 = vpop.f32.mrb[0].mxu0
    %615 = vmatprep.mubr.f32.mxu0 0.0
    %616 = vmatmul.mubr.f32.gmra.mrb[0].mxu0 %v400
    %v617 = vpop.f32.mrb[0].mxu0
    %v618 = vadd.f32 %v297, %v617
    %v619 = vpop.f32.mrb[0].mxu0
    %620 = vmatprep.mubr.f32.mxu0 0.0
    %621 = vmatmul.mubr.f32.gmra.mrb[0].mxu0 %v403
    %v622 = vpop.f32.mrb[0].mxu0
    %v623 = vadd.f32 %v302, %v622
    %v624 = vpop.f32.mrb[0].mxu0
    %625 = vmatprep.mubr.f32.mxu0 0.0
    %626 = vmatmul.mubr.f32.gmra.mrb[0].mxu0 %v406
    %v627 = vpop.f32.mrb[0].mxu0
    %v628 = vadd.f32 %v307, %v627
    %v629 = vpop.f32.mrb[0].mxu0
    %630 = vmatprep.mubr.f32.mxu0 0.0
    %631 = vmatmul.mubr.f32.gmra.mrb[0].mxu0 %v409
    %v632 = vpop.f32.mrb[0].mxu0
    %v633 = vadd.f32 %v312, %v632
    %v634 = vpop.f32.mrb[0].mxu0
    %635 = vdwg.mxu0
    %v636 = vmax.f32 %v478, 0.0
    %v637 = vmax.f32 %v483, 0.0
    %v638 = vmax.f32 %v488, 0.0
    %v639 = vmax.f32 %v493, 0.0
    %v640 = vmax.f32 %v498, 0.0
    %v641 = vmax.f32 %v503, 0.0
    %v642 = vmax.f32 %v508, 0.0
    %v643 = vmax.f32 %v513, 0.0
    %v644 = vmax.f32 %v518, 0.0
    %v645 = vmax.f32 %v523, 0.0
    %v646 = vmax.f32 %v528, 0.0
    %v647 = vmax.f32 %v533, 0.0
    %v648 = vmax.f32 %v538, 0.0
    %v649 = vmax.f32 %v543, 0.0
    %v650 = vmax.f32 %v548, 0.0
    %v651 = vmax.f32 %v553, 0.0
    %v652 = vmax.f32 %v558, 0.0
    %v653 = vmax.f32 %v563, 0.0
    %v654 = vmax.f32 %v568, 0.0
    %v655 = vmax.f32 %v573, 0.0
    %v656 = vmax.f32 %v578, 0.0
    %v657 = vmax.f32 %v583, 0.0
    %v658 = vmax.f32 %v588, 0.0
    %v659 = vmax.f32 %v593, 0.0
    %v660 = vmax.f32 %v598, 0.0
    %v661 = vmax.f32 %v603, 0.0
    %v662 = vmax.f32 %v608, 0.0
    %v663 = vmax.f32 %v613, 0.0
    %v664 = vmax.f32 %v618, 0.0
    %v665 = vmax.f32 %v623, 0.0
    %v666 = vmax.f32 %v628, 0.0
    %v667 = vmax.f32 %v633, 0.0
    %v668 = vld [vmem:[%s2] sm:$0xff]
    %v669 = vld [vmem:[%s2 + $0x8] sm:$0xff]
    %v670 = vld [vmem:[%s2 + $0x10] sm:$0xff]
    %v671 = vld [vmem:[%s2 + $0x18] sm:$0xff]
    %v672 = vld [vmem:[%s2 + $0x20] sm:$0xff]
    %v673 = vld [vmem:[%s2 + $0x28] sm:$0xff]
    %v674 = vld [vmem:[%s2 + $0x30] sm:$0xff]
    %v675 = vld [vmem:[%s2 + $0x38] sm:$0xff]
    %v676 = vld [vmem:[%s2 + $0x40] sm:$0xff]
    %v677 = vld [vmem:[%s2 + $0x48] sm:$0xff]
    %v678 = vld [vmem:[%s2 + $0x50] sm:$0xff]
    %v679 = vld [vmem:[%s2 + $0x58] sm:$0xff]
    %v680 = vld [vmem:[%s2 + $0x60] sm:$0xff]
    %v681 = vld [vmem:[%s2 + $0x68] sm:$0xff]
    %v682 = vld [vmem:[%s2 + $0x70] sm:$0xff]
    %v683 = vld [vmem:[%s2 + $0x78] sm:$0xff]
    %v684 = vld [vmem:[%s2 + $0x80] sm:$0xff]
    %v685 = vld [vmem:[%s2 + $0x88] sm:$0xff]
    %v686 = vld [vmem:[%s2 + $0x90] sm:$0xff]
    %v687 = vld [vmem:[%s2 + $0x98] sm:$0xff]
    %v688 = vld [vmem:[%s2 + $0xa0] sm:$0xff]
    %v689 = vld [vmem:[%s2 + $0xa8] sm:$0xff]
    %v690 = vld [vmem:[%s2 + $0xb0] sm:$0xff]
    %v691 = vld [vmem:[%s2 + $0xb8] sm:$0xff]
    %v692 = vld [vmem:[%s2 + $0xc0] sm:$0xff]
    %v693 = vld [vmem:[%s2 + $0xc8] sm:$0xff]
    %v694 = vld [vmem:[%s2 + $0xd0] sm:$0xff]
    %v695 = vld [vmem:[%s2 + $0xd8] sm:$0xff]
    %v696 = vld [vmem:[%s2 + $0xe0] sm:$0xff]
    %v697 = vld [vmem:[%s2 + $0xe8] sm:$0xff]
    %v698 = vld [vmem:[%s2 + $0xf0] sm:$0xff]
    %v699 = vld [vmem:[%s2 + $0xf8] sm:$0xff]
    %v700 = vld [vmem:[%s2 + $0x100] sm:$0xff]
    %v701 = vld [vmem:[%s2 + $0x108] sm:$0xff]
    %v702 = vld [vmem:[%s2 + $0x110] sm:$0xff]
    %v703 = vld [vmem:[%s2 + $0x118] sm:$0xff]
    %v704 = vld [vmem:[%s2 + $0x120] sm:$0xff]
    %v705 = vld [vmem:[%s2 + $0x128] sm:$0xff]
    %v706 = vld [vmem:[%s2 + $0x130] sm:$0xff]
    %v707 = vld [vmem:[%s2 + $0x138] sm:$0xff]
    %v708 = vld [vmem:[%s2 + $0x140] sm:$0xff]
    %v709 = vld [vmem:[%s2 + $0x148] sm:$0xff]
    %v710 = vld [vmem:[%s2 + $0x150] sm:$0xff]
    %v711 = vld [vmem:[%s2 + $0x158] sm:$0xff]
    %v712 = vld [vmem:[%s2 + $0x160] sm:$0xff]
    %v713 = vld [vmem:[%s2 + $0x168] sm:$0xff]
    %v714 = vld [vmem:[%s2 + $0x170] sm:$0xff]
    %v715 = vld [vmem:[%s2 + $0x178] sm:$0xff]
    %v716 = vld [vmem:[%s2 + $0x180] sm:$0xff]
    %v717 = vld [vmem:[%s2 + $0x188] sm:$0xff]
    %v718 = vld [vmem:[%s2 + $0x190] sm:$0xff]
    %v719 = vld [vmem:[%s2 + $0x198] sm:$0xff]
    %v720 = vld [vmem:[%s2 + $0x1a0] sm:$0xff]
    %v721 = vld [vmem:[%s2 + $0x1a8] sm:$0xff]
    %v722 = vld [vmem:[%s2 + $0x1b0] sm:$0xff]
    %v723 = vld [vmem:[%s2 + $0x1b8] sm:$0xff]
    %v724 = vld [vmem:[%s2 + $0x1c0] sm:$0xff]
    %v725 = vld [vmem:[%s2 + $0x1c8] sm:$0xff]
    %v726 = vld [vmem:[%s2 + $0x1d0] sm:$0xff]
    %v727 = vld [vmem:[%s2 + $0x1d8] sm:$0xff]
    %v728 = vld [vmem:[%s2 + $0x1e0] sm:$0xff]
    %v729 = vld [vmem:[%s2 + $0x1e8] sm:$0xff]
    %v730 = vld [vmem:[%s2 + $0x1f0] sm:$0xff]
    %v731 = vld [vmem:[%s2 + $0x1f8] sm:$0xff]
    %732 = vset.pattern.permute.xlu0 1
    %733 = vperm.xlu0 %732, %v90
    %v734 = vpop.permute.xlu0 %733
    %736 = vset.pattern.permute.xlu0 1
    %737 = vperm.xlu0 %736, %v91
    %v738 = vpop.permute.xlu0 %737
    %740 = vset.pattern.permute.xlu0 1
    %741 = vperm.xlu0 %740, %v92
    %v742 = vpop.permute.xlu0 %741
    %744 = vset.pattern.permute.xlu0 1
    %745 = vperm.xlu0 %744, %v93
    %v746 = vpop.permute.xlu0 %745
    %748 = vset.pattern.permute.xlu0 1
    %749 = vperm.xlu0 %748, %v94
    %v750 = vpop.permute.xlu0 %749
    %752 = vset.pattern.permute.xlu0 1
    %753 = vperm.xlu0 %752, %v95
    %v754 = vpop.permute.xlu0 %753
    %756 = vset.pattern.permute.xlu0 1
    %757 = vperm.xlu0 %756, %v96
    %v758 = vpop.permute.xlu0 %757
    %760 = vset.pattern.permute.xlu0 1
    %761 = vperm.xlu0 %760, %v97
    %v762 = vpop.permute.xlu0 %761
    %764 = vset.pattern.permute.xlu0 1
    %765 = vperm.xlu0 %764, %v98
    %v766 = vpop.permute.xlu0 %765
    %768 = vset.pattern.permute.xlu0 1
    %769 = vperm.xlu0 %768, %v99
    %v770 = vpop.permute.xlu0 %769
    %772 = vset.pattern.permute.xlu0 1
    %773 = vperm.xlu0 %772, %v100
    %v774 = vpop.permute.xlu0 %773
    %776 = vset.pattern.permute.xlu0 1
    %777 = vperm.xlu0 %776, %v101
    %v778 = vpop.permute.xlu0 %777
    %780 = vset.pattern.permute.xlu0 1
    %781 = vperm.xlu0 %780, %v102
    %v782 = vpop.permute.xlu0 %781
    %784 = vset.pattern.permute.xlu0 1
    %785 = vperm.xlu0 %784, %v103
    %v786 = vpop.permute.xlu0 %785
    %788 = vset.pattern.permute.xlu0 1
    %789 = vperm.xlu0 %788, %v104
    %v790 = vpop.permute.xlu0 %789
    %792 = vset.pattern.permute.xlu0 1
    %793 = vperm.xlu0 %792, %v105
    %v794 = vpop.permute.xlu0 %793
    %796 = vset.pattern.permute.xlu0 1
    %797 = vperm.xlu0 %796, %v106
    %v798 = vpop.permute.xlu0 %797
    %800 = vset.pattern.permute.xlu0 1
    %801 = vperm.xlu0 %800, %v107
    %v802 = vpop.permute.xlu0 %801
    %804 = vset.pattern.permute.xlu0 1
    %805 = vperm.xlu0 %804, %v108
    %v806 = vpop.permute.xlu0 %805
    %808 = vset.pattern.permute.xlu0 1
    %809 = vperm.xlu0 %808, %v109
    %v810 = vpop.permute.xlu0 %809
    %812 = vset.pattern.permute.xlu0 1
    %813 = vperm.xlu0 %812, %v110
    %v814 = vpop.permute.xlu0 %813
    %816 = vset.pattern.permute.xlu0 1
    %817 = vperm.xlu0 %816, %v111
    %v818 = vpop.permute.xlu0 %817
    %820 = vset.pattern.permute.xlu0 1
    %821 = vperm.xlu0 %820, %v112
    %v822 = vpop.permute.xlu0 %821
    %824 = vset.pattern.permute.xlu0 1
    %825 = vperm.xlu0 %824, %v113
    %v826 = vpop.permute.xlu0 %825
    %828 = vset.pattern.permute.xlu0 1
    %829 = vperm.xlu0 %828, %v114
    %v830 = vpop.permute.xlu0 %829
    %832 = vset.pattern.permute.xlu0 1
    %833 = vperm.xlu0 %832, %v115
    %v834 = vpop.permute.xlu0 %833
    %836 = vset.pattern.permute.xlu0 1
    %837 = vperm.xlu0 %836, %v116
    %v838 = vpop.permute.xlu0 %837
    %840 = vset.pattern.permute.xlu0 1
    %841 = vperm.xlu0 %840, %v117
    %v842 = vpop.permute.xlu0 %841
    %844 = vset.pattern.permute.xlu0 1
    %845 = vperm.xlu0 %844, %v118
    %v846 = vpop.permute.xlu0 %845
    %848 = vset.pattern.permute.xlu0 1
    %849 = vperm.xlu0 %848, %v119
    %v850 = vpop.permute.xlu0 %849
    %852 = vset.pattern.permute.xlu0 1
    %853 = vperm.xlu0 %852, %v120
    %v854 = vpop.permute.xlu0 %853
    %856 = vset.pattern.permute.xlu0 1
    %857 = vperm.xlu0 %856, %v121
    %v858 = vpop.permute.xlu0 %857
    %860 = vmatprep.subr.mxu0 0.0
    %861 = vmatpush1.msra.mxu0 %v636
    %862 = vmatprep.subr.mxu0 0.0
    %863 = vmatpush1.msra.mxu0 %v637
    %864 = vmatprep.subr.mxu0 0.0
    %865 = vmatpush1.msra.mxu0 %v638
    %866 = vmatprep.subr.mxu0 0.0
    %867 = vmatpush1.msra.mxu0 %v639
    %868 = vmatprep.subr.mxu0 0.0
    %869 = vmatpush1.msra.mxu0 %v640
    %870 = vmatprep.subr.mxu0 0.0
    %871 = vmatpush1.msra.mxu0 %v641
    %872 = vmatprep.subr.mxu0 0.0
    %873 = vmatpush1.msra.mxu0 %v642
    %874 = vmatprep.subr.mxu0 0.0
    %875 = vmatpush1.msra.mxu0 %v643
    %876 = vmatprep.subr.mxu0 0.0
    %877 = vmatpush1.msra.mxu0 %v644
    %878 = vmatprep.subr.mxu0 0.0
    %879 = vmatpush1.msra.mxu0 %v645
    %880 = vmatprep.subr.mxu0 0.0
    %881 = vmatpush1.msra.mxu0 %v646
    %882 = vmatprep.subr.mxu0 0.0
    %883 = vmatpush1.msra.mxu0 %v647
    %884 = vmatprep.subr.mxu0 0.0
    %885 = vmatpush1.msra.mxu0 %v648
    %886 = vmatprep.subr.mxu0 0.0
    %887 = vmatpush1.msra.mxu0 %v649
    %888 = vmatprep.subr.mxu0 0.0
    %889 = vmatpush1.msra.mxu0 %v650
    %890 = vmatprep.subr.mxu0 0.0
    %891 = vmatpush1.msra.mxu0 %v651
    %892 = vmatprep.subr.mxu0 0.0
    %893 = vmatpush1.msra.mxu0 %v652
    %894 = vmatprep.subr.mxu0 0.0
    %895 = vmatpush1.msra.mxu0 %v653
    %896 = vmatprep.subr.mxu0 0.0
    %897 = vmatpush1.msra.mxu0 %v654
    %898 = vmatprep.subr.mxu0 0.0
    %899 = vmatpush1.msra.mxu0 %v655
    %900 = vmatprep.subr.mxu0 0.0
    %901 = vmatpush1.msra.mxu0 %v656
    %902 = vmatprep.subr.mxu0 0.0
    %903 = vmatpush1.msra.mxu0 %v657
    %904 = vmatprep.subr.mxu0 0.0
    %905 = vmatpush1.msra.mxu0 %v658
    %906 = vmatprep.subr.mxu0 0.0
    %907 = vmatpush1.msra.mxu0 %v659
    %908 = vmatprep.subr.mxu0 0.0
    %909 = vmatpush1.msra.mxu0 %v660
    %910 = vmatprep.subr.mxu0 0.0
    %911 = vmatpush1.msra.mxu0 %v661
    %912 = vmatprep.subr.mxu0 0.0
    %913 = vmatpush1.msra.mxu0 %v662
    %914 = vmatprep.subr.mxu0 0.0
    %915 = vmatpush1.msra.mxu0 %v663
    %916 = vmatprep.subr.mxu0 0.0
    %917 = vmatpush1.msra.mxu0 %v664
    %918 = vmatprep.subr.mxu0 0.0
    %919 = vmatpush1.msra.mxu0 %v665
    %920 = vmatprep.subr.mxu0 0.0
    %921 = vmatpush1.msra.mxu0 %v666
    %922 = vmatprep.subr.mxu0 0.0
    %923 = vmatpush1.msra.mxu0 %v667
    %924 = vmatprep.mubr.f32.mxu0 %v669
    %925 = vmatmul.mubr.f32.gmra.mrb[0].mxu0 %v668
    %v926 = vpop.f32.mrb[0].mxu0
    %v927 = vadd.f32 %v734, %v926
    %v928 = vpop.f32.mrb[0].mxu0
    %929 = vmatprep.mubr.f32.mxu0 %v671
    %930 = vmatmul.mubr.f32.gmra.mrb[0].mxu0 %v670
    %v931 = vpop.f32.mrb[0].mxu0
    %v932 = vadd.f32 %v738, %v931
    %v933 = vpop.f32.mrb[0].mxu0
    %934 = vmatprep.mubr.f32.mxu0 %v673
    %935 = vmatmul.mubr.f32.gmra.mrb[0].mxu0 %v672
    %v936 = vpop.f32.mrb[0].mxu0
    %v937 = vadd.f32 %v742, %v936
    %v938 = vpop.f32.mrb[0].mxu0
    %939 = vmatprep.mubr.f32.mxu0 %v675
    %940 = vmatmul.mubr.f32.gmra.mrb[0].mxu0 %v674
    %v941 = vpop.f32.mrb[0].mxu0
    %v942 = vadd.f32 %v746, %v941
    %v943 = vpop.f32.mrb[0].mxu0
    %944 = vmatprep.mubr.f32.mxu0 %v677
    %945 = vmatmul.mubr.f32.gmra.mrb[0].mxu0 %v676
    %v946 = vpop.f32.mrb[0].mxu0
    %v947 = vadd.f32 %v750, %v946
    %v948 = vpop.f32.mrb[0].mxu0
    %949 = vmatprep.mubr.f32.mxu0 %v679
    %950 = vmatmul.mubr.f32.gmra.mrb[0].mxu0 %v678
    %v951 = vpop.f32.mrb[0].mxu0
    %v952 = vadd.f32 %v754, %v951
    %v953 = vpop.f32.mrb[0].mxu0
    %954 = vmatprep.mubr.f32.mxu0 %v681
    %955 = vmatmul.mubr.f32.gmra.mrb[0].mxu0 %v680
    %v956 = vpop.f32.mrb[0].mxu0
    %v957 = vadd.f32 %v758, %v956
    %v958 = vpop.f32.mrb[0].mxu0
    %959 = vmatprep.mubr.f32.mxu0 %v683
    %960 = vmatmul.mubr.f32.gmra.mrb[0].mxu0 %v682
    %v961 = vpop.f32.mrb[0].mxu0
    %v962 = vadd.f32 %v762, %v961
    %v963 = vpop.f32.mrb[0].mxu0
    %964 = vmatprep.mubr.f32.mxu0 %v685
    %965 = vmatmul.mubr.f32.gmra.mrb[0].mxu0 %v684
    %v966 = vpop.f32.mrb[0].mxu0
    %v967 = vadd.f32 %v766, %v966
    %v968 = vpop.f32.mrb[0].mxu0
    %969 = vmatprep.mubr.f32.mxu0 %v687
    %970 = vmatmul.mubr.f32.gmra.mrb[0].mxu0 %v686
    %v971 = vpop.f32.mrb[0].mxu0
    %v972 = vadd.f32 %v770, %v971
    %v973 = vpop.f32.mrb[0].mxu0
    %974 = vmatprep.mubr.f32.mxu0 %v689
    %975 = vmatmul.mubr.f32.gmra.mrb[0].mxu0 %v688
    %v976 = vpop.f32.mrb[0].mxu0
    %v977 = vadd.f32 %v774, %v976
    %v978 = vpop.f32.mrb[0].mxu0
    %979 = vmatprep.mubr.f32.mxu0 %v691
    %980 = vmatmul.mubr.f32.gmra.mrb[0].mxu0 %v690
    %v981 = vpop.f32.mrb[0].mxu0
    %v982 = vadd.f32 %v778, %v981
    %v983 = vpop.f32.mrb[0].mxu0
    %984 = vmatprep.mubr.f32.mxu0 %v693
    %985 = vmatmul.mubr.f32.gmra.mrb[0].mxu0 %v692
    %v986 = vpop.f32.mrb[0].mxu0
    %v987 = vadd.f32 %v782, %v986
    %v988 = vpop.f32.mrb[0].mxu0
    %989 = vmatprep.mubr.f32.mxu0 %v695
    %990 = vmatmul.mubr.f32.gmra.mrb[0].mxu0 %v694
    %v991 = vpop.f32.mrb[0].mxu0
    %v992 = vadd.f32 %v786, %v991
    %v993 = vpop.f32.mrb[0].mxu0
    %994 = vmatprep.mubr.f32.mxu0 %v697
    %995 = vmatmul.mubr.f32.gmra.mrb[0].mxu0 %v696
    %v996 = vpop.f32.mrb[0].mxu0
    %v997 = vadd.f32 %v790, %v996
    %v998 = vpop.f32.mrb[0].mxu0
    %999 = vmatprep.mubr.f32.mxu0 %v699
    %1000 = vmatmul.mubr.f32.gmra.mrb[0].mxu0 %v698
    %v1001 = vpop.f32.mrb[0].mxu0
    %v1002 = vadd.f32 %v794, %v1001
    %v1003 = vpop.f32.mrb[0].mxu0
    %1004 = vmatprep.mubr.f32.mxu0 %v701
    %1005 = vmatmul.mubr.f32.gmra.mrb[0].mxu0 %v700
    %v1006 = vpop.f32.mrb[0].mxu0
    %v1007 = vadd.f32 %v798, %v1006
    %v1008 = vpop.f32.mrb[0].mxu0
    %1009 = vmatprep.mubr.f32.mxu0 %v703
    %1010 = vmatmul.mubr.f32.gmra.mrb[0].mxu0 %v702
    %v1011 = vpop.f32.mrb[0].mxu0
    %v1012 = vadd.f32 %v802, %v1011
    %v1013 = vpop.f32.mrb[0].mxu0
    %1014 = vmatprep.mubr.f32.mxu0 %v705
    %1015 = vmatmul.mubr.f32.gmra.mrb[0].mxu0 %v704
    %v1016 = vpop.f32.mrb[0].mxu0
    %v1017 = vadd.f32 %v806, %v1016
    %v1018 = vpop.f32.mrb[0].mxu0
    %1019 = vmatprep.mubr.f32.mxu0 %v707
    %1020 = vmatmul.mubr.f32.gmra.mrb[0].mxu0 %v706
    %v1021 = vpop.f32.mrb[0].mxu0
    %v1022 = vadd.f32 %v810, %v1021
    %v1023 = vpop.f32.mrb[0].mxu0
    %1024 = vmatprep.mubr.f32.mxu0 %v709
    %1025 = vmatmul.mubr.f32.gmra.mrb[0].mxu0 %v708
    %v1026 = vpop.f32.mrb[0].mxu0
    %v1027 = vadd.f32 %v814, %v1026
    %v1028 = vpop.f32.mrb[0].mxu0
    %1029 = vmatprep.mubr.f32.mxu0 %v711
    %1030 = vmatmul.mubr.f32.gmra.mrb[0].mxu0 %v710
    %v1031 = vpop.f32.mrb[0].mxu0
    %v1032 = vadd.f32 %v818, %v1031
    %v1033 = vpop.f32.mrb[0].mxu0
    %1034 = vmatprep.mubr.f32.mxu0 %v713
    %1035 = vmatmul.mubr.f32.gmra.mrb[0].mxu0 %v712
    %v1036 = vpop.f32.mrb[0].mxu0
    %v1037 = vadd.f32 %v822, %v1036
    %v1038 = vpop.f32.mrb[0].mxu0
    %1039 = vmatprep.mubr.f32.mxu0 %v715
    %1040 = vmatmul.mubr.f32.gmra.mrb[0].mxu0 %v714
    %v1041 = vpop.f32.mrb[0].mxu0
    %v1042 = vadd.f32 %v826, %v1041
    %v1043 = vpop.f32.mrb[0].mxu0
    %1044 = vmatprep.mubr.f32.mxu0 %v717
    %1045 = vmatmul.mubr.f32.gmra.mrb[0].mxu0 %v716
    %v1046 = vpop.f32.mrb[0].mxu0
    %v1047 = vadd.f32 %v830, %v1046
    %v1048 = vpop.f32.mrb[0].mxu0
    %1049 = vmatprep.mubr.f32.mxu0 %v719
    %1050 = vmatmul.mubr.f32.gmra.mrb[0].mxu0 %v718
    %v1051 = vpop.f32.mrb[0].mxu0
    %v1052 = vadd.f32 %v834, %v1051
    %v1053 = vpop.f32.mrb[0].mxu0
    %1054 = vmatprep.mubr.f32.mxu0 %v721
    %1055 = vmatmul.mubr.f32.gmra.mrb[0].mxu0 %v720
    %v1056 = vpop.f32.mrb[0].mxu0
    %v1057 = vadd.f32 %v838, %v1056
    %v1058 = vpop.f32.mrb[0].mxu0
    %1059 = vmatprep.mubr.f32.mxu0 %v723
    %1060 = vmatmul.mubr.f32.gmra.mrb[0].mxu0 %v722
    %v1061 = vpop.f32.mrb[0].mxu0
    %v1062 = vadd.f32 %v842, %v1061
    %v1063 = vpop.f32.mrb[0].mxu0
    %1064 = vmatprep.mubr.f32.mxu0 %v725
    %1065 = vmatmul.mubr.f32.gmra.mrb[0].mxu0 %v724
    %v1066 = vpop.f32.mrb[0].mxu0
    %v1067 = vadd.f32 %v846, %v1066
    %v1068 = vpop.f32.mrb[0].mxu0
    %1069 = vmatprep.mubr.f32.mxu0 %v727
    %1070 = vmatmul.mubr.f32.gmra.mrb[0].mxu0 %v726
    %v1071 = vpop.f32.mrb[0].mxu0
    %v1072 = vadd.f32 %v850, %v1071
    %v1073 = vpop.f32.mrb[0].mxu0
    %1074 = vmatprep.mubr.f32.mxu0 %v729
    %1075 = vmatmul.mubr.f32.gmra.mrb[0].mxu0 %v728
    %v1076 = vpop.f32.mrb[0].mxu0
    %v1077 = vadd.f32 %v854, %v1076
    %v1078 = vpop.f32.mrb[0].mxu0
    %1079 = vmatprep.mubr.f32.mxu0 %v731
    %1080 = vmatmul.mubr.f32.gmra.mrb[0].mxu0 %v730
    %v1081 = vpop.f32.mrb[0].mxu0
    %v1082 = vadd.f32 %v858, %v1081
    %v1083 = vpop.f32.mrb[0].mxu0
    %1084 = vdwg.mxu0
    %v1085 = vmax.f32 %v927, 0.0
    %v1086 = vmax.f32 %v932, 0.0
    %v1087 = vmax.f32 %v937, 0.0
    %v1088 = vmax.f32 %v942, 0.0
    %v1089 = vmax.f32 %v947, 0.0
    %v1090 = vmax.f32 %v952, 0.0
    %v1091 = vmax.f32 %v957, 0.0
    %v1092 = vmax.f32 %v962, 0.0
    %v1093 = vmax.f32 %v967, 0.0
    %v1094 = vmax.f32 %v972, 0.0
    %v1095 = vmax.f32 %v977, 0.0
    %v1096 = vmax.f32 %v982, 0.0
    %v1097 = vmax.f32 %v987, 0.0
    %v1098 = vmax.f32 %v992, 0.0
    %v1099 = vmax.f32 %v997, 0.0
    %v1100 = vmax.f32 %v1002, 0.0
    %v1101 = vmax.f32 %v1007, 0.0
    %v1102 = vmax.f32 %v1012, 0.0
    %v1103 = vmax.f32 %v1017, 0.0
    %v1104 = vmax.f32 %v1022, 0.0
    %v1105 = vmax.f32 %v1027, 0.0
    %v1106 = vmax.f32 %v1032, 0.0
    %v1107 = vmax.f32 %v1037, 0.0
    %v1108 = vmax.f32 %v1042, 0.0
    %v1109 = vmax.f32 %v1047, 0.0
    %v1110 = vmax.f32 %v1052, 0.0
    %v1111 = vmax.f32 %v1057, 0.0
    %v1112 = vmax.f32 %v1062, 0.0
    %v1113 = vmax.f32 %v1067, 0.0
    %v1114 = vmax.f32 %v1072, 0.0
    %v1115 = vmax.f32 %v1077, 0.0
    %v1116 = vmax.f32 %v1082, 0.0
    %v1117 = vld [vmem:[#allocation2] sm:$0xff]
    %v1118 = vld [vmem:[#allocation2 + $0x8] sm:$0xff]
    %v1119 = vld [vmem:[#allocation2 + $0x10] sm:$0xff]
    %v1120 = vld [vmem:[#allocation2 + $0x18] sm:$0xff]
    %v1121 = vld [vmem:[#allocation2 + $0x20] sm:$0xff]
    %v1122 = vld [vmem:[#allocation2 + $0x28] sm:$0xff]
    %v1123 = vld [vmem:[#allocation2 + $0x30] sm:$0xff]
    %v1124 = vld [vmem:[#allocation2 + $0x38] sm:$0xff]
    %v1125 = vld [vmem:[#allocation2 + $0x40] sm:$0xff]
    %v1126 = vld [vmem:[#allocation2 + $0x48] sm:$0xff]
    %v1127 = vld [vmem:[#allocation2 + $0x50] sm:$0xff]
    %v1128 = vld [vmem:[#allocation2 + $0x58] sm:$0xff]
    %v1129 = vld [vmem:[#allocation2 + $0x60] sm:$0xff]
    %v1130 = vld [vmem:[#allocation2 + $0x68] sm:$0xff]
    %v1131 = vld [vmem:[#allocation2 + $0x70] sm:$0xff]
    %v1132 = vld [vmem:[#allocation2 + $0x78] sm:$0xff]
    %v1133 = vld [vmem:[#allocation2 + $0x80] sm:$0xff]
    %v1134 = vld [vmem:[#allocation2 + $0x88] sm:$0xff]
    %v1135 = vld [vmem:[#allocation2 + $0x90] sm:$0xff]
    %v1136 = vld [vmem:[#allocation2 + $0x98] sm:$0xff]
    %v1137 = vld [vmem:[#allocation2 + $0xa0] sm:$0xff]
    %v1138 = vld [vmem:[#allocation2 + $0xa8] sm:$0xff]
    %v1139 = vld [vmem:[#allocation2 + $0xb0] sm:$0xff]
    %v1140 = vld [vmem:[#allocation2 + $0xb8] sm:$0xff]
    %v1141 = vld [vmem:[#allocation2 + $0xc0] sm:$0xff]
    %v1142 = vld [vmem:[#allocation2 + $0xc8] sm:$0xff]
    %v1143 = vld [vmem:[#allocation2 + $0xd0] sm:$0xff]
    %v1144 = vld [vmem:[#allocation2 + $0xd8] sm:$0xff]
    %v1145 = vld [vmem:[#allocation2 + $0xe0] sm:$0xff]
    %v1146 = vld [vmem:[#allocation2 + $0xe8] sm:$0xff]
    %v1147 = vld [vmem:[#allocation2 + $0xf0] sm:$0xff]
    %v1148 = vld [vmem:[#allocation2 + $0xf8] sm:$0xff]
    %v1149 = vld [vmem:[#allocation2 + $0x100] sm:$0xff]
    %v1150 = vld [vmem:[#allocation2 + $0x108] sm:$0xff]
    %v1151 = vld [vmem:[#allocation2 + $0x110] sm:$0xff]
    %v1152 = vld [vmem:[#allocation2 + $0x118] sm:$0xff]
    %v1153 = vld [vmem:[#allocation2 + $0x120] sm:$0xff]
    %v1154 = vld [vmem:[#allocation2 + $0x128] sm:$0xff]
    %v1155 = vld [vmem:[#allocation2 + $0x130] sm:$0xff]
    %v1156 = vld [vmem:[#allocation2 + $0x138] sm:$0xff]
    %v1157 = vld [vmem:[#allocation2 + $0x140] sm:$0xff]
    %v1158 = vld [vmem:[#allocation2 + $0x148] sm:$0xff]
    %v1159 = vld [vmem:[#allocation2 + $0x150] sm:$0xff]
    %v1160 = vld [vmem:[#allocation2 + $0x158] sm:$0xff]
    %v1161 = vld [vmem:[#allocation2 + $0x160] sm:$0xff]
    %v1162 = vld [vmem:[#allocation2 + $0x168] sm:$0xff]
    %v1163 = vld [vmem:[#allocation2 + $0x170] sm:$0xff]
    %v1164 = vld [vmem:[#allocation2 + $0x178] sm:$0xff]
    %v1165 = vld [vmem:[#allocation2 + $0x180] sm:$0xff]
    %v1166 = vld [vmem:[#allocation2 + $0x188] sm:$0xff]
    %v1167 = vld [vmem:[#allocation2 + $0x190] sm:$0xff]
    %v1168 = vld [vmem:[#allocation2 + $0x198] sm:$0xff]
    %v1169 = vld [vmem:[#allocation2 + $0x1a0] sm:$0xff]
    %v1170 = vld [vmem:[#allocation2 + $0x1a8] sm:$0xff]
    %v1171 = vld [vmem:[#allocation2 + $0x1b0] sm:$0xff]
    %v1172 = vld [vmem:[#allocation2 + $0x1b8] sm:$0xff]
    %v1173 = vld [vmem:[#allocation2 + $0x1c0] sm:$0xff]
    %v1174 = vld [vmem:[#allocation2 + $0x1c8] sm:$0xff]
    %v1175 = vld [vmem:[#allocation2 + $0x1d0] sm:$0xff]
    %v1176 = vld [vmem:[#allocation2 + $0x1d8] sm:$0xff]
    %v1177 = vld [vmem:[#allocation2 + $0x1e0] sm:$0xff]
    %v1178 = vld [vmem:[#allocation2 + $0x1e8] sm:$0xff]
    %v1179 = vld [vmem:[#allocation2 + $0x1f0] sm:$0xff]
    %v1180 = vld [vmem:[#allocation2 + $0x1f8] sm:$0xff]
    %1181 = vset.pattern.permute.xlu0 2
    %1182 = vperm.xlu0 %1181, %v90
    %v1183 = vpop.permute.xlu0 %1182
    %1185 = vset.pattern.permute.xlu0 2
    %1186 = vperm.xlu0 %1185, %v91
    %v1187 = vpop.permute.xlu0 %1186
    %1189 = vset.pattern.permute.xlu0 2
    %1190 = vperm.xlu0 %1189, %v92
    %v1191 = vpop.permute.xlu0 %1190
    %1193 = vset.pattern.permute.xlu0 2
    %1194 = vperm.xlu0 %1193, %v93
    %v1195 = vpop.permute.xlu0 %1194
    %1197 = vset.pattern.permute.xlu0 2
    %1198 = vperm.xlu0 %1197, %v94
    %v1199 = vpop.permute.xlu0 %1198
    %1201 = vset.pattern.permute.xlu0 2
    %1202 = vperm.xlu0 %1201, %v95
    %v1203 = vpop.permute.xlu0 %1202
    %1205 = vset.pattern.permute.xlu0 2
    %1206 = vperm.xlu0 %1205, %v96
    %v1207 = vpop.permute.xlu0 %1206
    %1209 = vset.pattern.permute.xlu0 2
    %1210 = vperm.xlu0 %1209, %v97
    %v1211 = vpop.permute.xlu0 %1210
    %1213 = vset.pattern.permute.xlu0 2
    %1214 = vperm.xlu0 %1213, %v98
    %v1215 = vpop.permute.xlu0 %1214
    %1217 = vset.pattern.permute.xlu0 2
    %1218 = vperm.xlu0 %1217, %v99
    %v1219 = vpop.permute.xlu0 %1218
    %1221 = vset.pattern.permute.xlu0 2
    %1222 = vperm.xlu0 %1221, %v100
    %v1223 = vpop.permute.xlu0 %1222
    %1225 = vset.pattern.permute.xlu0 2
    %1226 = vperm.xlu0 %1225, %v101
    %v1227 = vpop.permute.xlu0 %1226
    %1229 = vset.pattern.permute.xlu0 2
    %1230 = vperm.xlu0 %1229, %v102
    %v1231 = vpop.permute.xlu0 %1230
    %1233 = vset.pattern.permute.xlu0 2
    %1234 = vperm.xlu0 %1233, %v103
    %v1235 = vpop.permute.xlu0 %1234
    %1237 = vset.pattern.permute.xlu0 2
    %1238 = vperm.xlu0 %1237, %v104
    %v1239 = vpop.permute.xlu0 %1238
    %1241 = vset.pattern.permute.xlu0 2
    %1242 = vperm.xlu0 %1241, %v105
    %v1243 = vpop.permute.xlu0 %1242
    %1245 = vset.pattern.permute.xlu0 2
    %1246 = vperm.xlu0 %1245, %v106
    %v1247 = vpop.permute.xlu0 %1246
    %1249 = vset.pattern.permute.xlu0 2
    %1250 = vperm.xlu0 %1249, %v107
    %v1251 = vpop.permute.xlu0 %1250
    %1253 = vset.pattern.permute.xlu0 2
    %1254 = vperm.xlu0 %1253, %v108
    %v1255 = vpop.permute.xlu0 %1254
    %1257 = vset.pattern.permute.xlu0 2
    %1258 = vperm.xlu0 %1257, %v109
    %v1259 = vpop.permute.xlu0 %1258
    %1261 = vset.pattern.permute.xlu0 2
    %1262 = vperm.xlu0 %1261, %v110
    %v1263 = vpop.permute.xlu0 %1262
    %1265 = vset.pattern.permute.xlu0 2
    %1266 = vperm.xlu0 %1265, %v111
    %v1267 = vpop.permute.xlu0 %1266
    %1269 = vset.pattern.permute.xlu0 2
    %1270 = vperm.xlu0 %1269, %v112
    %v1271 = vpop.permute.xlu0 %1270
    %1273 = vset.pattern.permute.xlu0 2
    %1274 = vperm.xlu0 %1273, %v113
    %v1275 = vpop.permute.xlu0 %1274
    %1277 = vset.pattern.permute.xlu0 2
    %1278 = vperm.xlu0 %1277, %v114
    %v1279 = vpop.permute.xlu0 %1278
    %1281 = vset.pattern.permute.xlu0 2
    %1282 = vperm.xlu0 %1281, %v115
    %v1283 = vpop.permute.xlu0 %1282
    %1285 = vset.pattern.permute.xlu0 2
    %1286 = vperm.xlu0 %1285, %v116
    %v1287 = vpop.permute.xlu0 %1286
    %1289 = vset.pattern.permute.xlu0 2
    %1290 = vperm.xlu0 %1289, %v117
    %v1291 = vpop.permute.xlu0 %1290
    %1293 = vset.pattern.permute.xlu0 2
    %1294 = vperm.xlu0 %1293, %v118
    %v1295 = vpop.permute.xlu0 %1294
    %1297 = vset.pattern.permute.xlu0 2
    %1298 = vperm.xlu0 %1297, %v119
    %v1299 = vpop.permute.xlu0 %1298
    %1301 = vset.pattern.permute.xlu0 2
    %1302 = vperm.xlu0 %1301, %v120
    %v1303 = vpop.permute.xlu0 %1302
    %1305 = vset.pattern.permute.xlu0 2
    %1306 = vperm.xlu0 %1305, %v121
    %v1307 = vpop.permute.xlu0 %1306
    %1309 = vmatprep.subr.mxu0 0.0
    %1310 = vmatpush1.msra.mxu0 %v1085
    %1311 = vmatprep.subr.mxu0 0.0
    %1312 = vmatpush1.msra.mxu0 %v1086
    %1313 = vmatprep.subr.mxu0 0.0
    %1314 = vmatpush1.msra.mxu0 %v1087
    %1315 = vmatprep.subr.mxu0 0.0
    %1316 = vmatpush1.msra.mxu0 %v1088
    %1317 = vmatprep.subr.mxu0 0.0
    %1318 = vmatpush1.msra.mxu0 %v1089
    %1319 = vmatprep.subr.mxu0 0.0
    %1320 = vmatpush1.msra.mxu0 %v1090
    %1321 = vmatprep.subr.mxu0 0.0
    %1322 = vmatpush1.msra.mxu0 %v1091
    %1323 = vmatprep.subr.mxu0 0.0
    %1324 = vmatpush1.msra.mxu0 %v1092
    %1325 = vmatprep.subr.mxu0 0.0
    %1326 = vmatpush1.msra.mxu0 %v1093
    %1327 = vmatprep.subr.mxu0 0.0
    %1328 = vmatpush1.msra.mxu0 %v1094
    %1329 = vmatprep.subr.mxu0 0.0
    %1330 = vmatpush1.msra.mxu0 %v1095
    %1331 = vmatprep.subr.mxu0 0.0
    %1332 = vmatpush1.msra.mxu0 %v1096
    %1333 = vmatprep.subr.mxu0 0.0
    %1334 = vmatpush1.msra.mxu0 %v1097
    %1335 = vmatprep.subr.mxu0 0.0
    %1336 = vmatpush1.msra.mxu0 %v1098
    %1337 = vmatprep.subr.mxu0 0.0
    %1338 = vmatpush1.msra.mxu0 %v1099
    %1339 = vmatprep.subr.mxu0 0.0
    %1340 = vmatpush1.msra.mxu0 %v1100
    %1341 = vmatprep.subr.mxu0 0.0
    %1342 = vmatpush1.msra.mxu0 %v1101
    %1343 = vmatprep.subr.mxu0 0.0
    %1344 = vmatpush1.msra.mxu0 %v1102
    %1345 = vmatprep.subr.mxu0 0.0
    %1346 = vmatpush1.msra.mxu0 %v1103
    %1347 = vmatprep.subr.mxu0 0.0
    %1348 = vmatpush1.msra.mxu0 %v1104
    %1349 = vmatprep.subr.mxu0 0.0
    %1350 = vmatpush1.msra.mxu0 %v1105
    %1351 = vmatprep.subr.mxu0 0.0
    %1352 = vmatpush1.msra.mxu0 %v1106
    %1353 = vmatprep.subr.mxu0 0.0
    %1354 = vmatpush1.msra.mxu0 %v1107
    %1355 = vmatprep.subr.mxu0 0.0
    %1356 = vmatpush1.msra.mxu0 %v1108
    %1357 = vmatprep.subr.mxu0 0.0
    %1358 = vmatpush1.msra.mxu0 %v1109
    %1359 = vmatprep.subr.mxu0 0.0
    %1360 = vmatpush1.msra.mxu0 %v1110
    %1361 = vmatprep.subr.mxu0 0.0
    %1362 = vmatpush1.msra.mxu0 %v1111
    %1363 = vmatprep.subr.mxu0 0.0
    %1364 = vmatpush1.msra.mxu0 %v1112
    %1365 = vmatprep.subr.mxu0 0.0
    %1366 = vmatpush1.msra.mxu0 %v1113
    %1367 = vmatprep.subr.mxu0 0.0
    %1368 = vmatpush1.msra.mxu0 %v1114
    %1369 = vmatprep.subr.mxu0 0.0
    %1370 = vmatpush1.msra.mxu0 %v1115
    %1371 = vmatprep.subr.mxu0 0.0
    %1372 = vmatpush1.msra.mxu0 %v1116
    %1373 = vmatprep.mubr.f32.mxu0 %v1118
    %1374 = vmatmul.mubr.f32.gmra.mrb[0].mxu0 %v1117
    %v1375 = vpop.f32.mrb[0].mxu0
    %v1376 = vadd.f32 %v1183, %v1375
    %v1377 = vpop.f32.mrb[0].mxu0
    %1378 = vmatprep.mubr.f32.mxu0 %v1120
    %1379 = vmatmul.mubr.f32.gmra.mrb[0].mxu0 %v1119
    %v1380 = vpop.f32.mrb[0].mxu0
    %v1381 = vadd.f32 %v1187, %v1380
    %v1382 = vpop.f32.mrb[0].mxu0
    %1383 = vmatprep.mubr.f32.mxu0 %v1122
    %1384 = vmatmul.mubr.f32.gmra.mrb[0].mxu0 %v1121
    %v1385 = vpop.f32.mrb[0].mxu0
    %v1386 = vadd.f32 %v1191, %v1385
    %v1387 = vpop.f32.mrb[0].mxu0
    %1388 = vmatprep.mubr.f32.mxu0 %v1124
    %1389 = vmatmul.mubr.f32.gmra.mrb[0].mxu0 %v1123
    %v1390 = vpop.f32.mrb[0].mxu0
    %v1391 = vadd.f32 %v1195, %v1390
    %v1392 = vpop.f32.mrb[0].mxu0
    %1393 = vmatprep.mubr.f32.mxu0 %v1126
    %1394 = vmatmul.mubr.f32.gmra.mrb[0].mxu0 %v1125
    %v1395 = vpop.f32.mrb[0].mxu0
    %v1396 = vadd.f32 %v1199, %v1395
    %v1397 = vpop.f32.mrb[0].mxu0
    %1398 = vmatprep.mubr.f32.mxu0 %v1128
    %1399 = vmatmul.mubr.f32.gmra.mrb[0].mxu0 %v1127
    %v1400 = vpop.f32.mrb[0].mxu0
    %v1401 = vadd.f32 %v1203, %v1400
    %v1402 = vpop.f32.mrb[0].mxu0
    %1403 = vmatprep.mubr.f32.mxu0 %v1130
    %1404 = vmatmul.mubr.f32.gmra.mrb[0].mxu0 %v1129
    %v1405 = vpop.f32.mrb[0].mxu0
    %v1406 = vadd.f32 %v1207, %v1405
    %v1407 = vpop.f32.mrb[0].mxu0
    %1408 = vmatprep.mubr.f32.mxu0 %v1132
    %1409 = vmatmul.mubr.f32.gmra.mrb[0].mxu0 %v1131
    %v1410 = vpop.f32.mrb[0].mxu0
    %v1411 = vadd.f32 %v1211, %v1410
    %v1412 = vpop.f32.mrb[0].mxu0
    %1413 = vmatprep.mubr.f32.mxu0 %v1134
    %1414 = vmatmul.mubr.f32.gmra.mrb[0].mxu0 %v1133
    %v1415 = vpop.f32.mrb[0].mxu0
    %v1416 = vadd.f32 %v1215, %v1415
    %v1417 = vpop.f32.mrb[0].mxu0
    %1418 = vmatprep.mubr.f32.mxu0 %v1136
    %1419 = vmatmul.mubr.f32.gmra.mrb[0].mxu0 %v1135
    %v1420 = vpop.f32.mrb[0].mxu0
    %v1421 = vadd.f32 %v1219, %v1420
    %v1422 = vpop.f32.mrb[0].mxu0
    %1423 = vmatprep.mubr.f32.mxu0 %v1138
    %1424 = vmatmul.mubr.f32.gmra.mrb[0].mxu0 %v1137
    %v1425 = vpop.f32.mrb[0].mxu0
    %v1426 = vadd.f32 %v1223, %v1425
    %v1427 = vpop.f32.mrb[0].mxu0
    %1428 = vmatprep.mubr.f32.mxu0 %v1140
    %1429 = vmatmul.mubr.f32.gmra.mrb[0].mxu0 %v1139
    %v1430 = vpop.f32.mrb[0].mxu0
    %v1431 = vadd.f32 %v1227, %v1430
    %v1432 = vpop.f32.mrb[0].mxu0
    %1433 = vmatprep.mubr.f32.mxu0 %v1142
    %1434 = vmatmul.mubr.f32.gmra.mrb[0].mxu0 %v1141
    %v1435 = vpop.f32.mrb[0].mxu0
    %v1436 = vadd.f32 %v1231, %v1435
    %v1437 = vpop.f32.mrb[0].mxu0
    %1438 = vmatprep.mubr.f32.mxu0 %v1144
    %1439 = vmatmul.mubr.f32.gmra.mrb[0].mxu0 %v1143
    %v1440 = vpop.f32.mrb[0].mxu0
    %v1441 = vadd.f32 %v1235, %v1440
    %v1442 = vpop.f32.mrb[0].mxu0
    %1443 = vmatprep.mubr.f32.mxu0 %v1146
    %1444 = vmatmul.mubr.f32.gmra.mrb[0].mxu0 %v1145
    %v1445 = vpop.f32.mrb[0].mxu0
    %v1446 = vadd.f32 %v1239, %v1445
    %v1447 = vpop.f32.mrb[0].mxu0
    %1448 = vmatprep.mubr.f32.mxu0 %v1148
    %1449 = vmatmul.mubr.f32.gmra.mrb[0].mxu0 %v1147
    %v1450 = vpop.f32.mrb[0].mxu0
    %v1451 = vadd.f32 %v1243, %v1450
    %v1452 = vpop.f32.mrb[0].mxu0
    %1453 = vmatprep.mubr.f32.mxu0 %v1150
    %1454 = vmatmul.mubr.f32.gmra.mrb[0].mxu0 %v1149
    %v1455 = vpop.f32.mrb[0].mxu0
    %v1456 = vadd.f32 %v1247, %v1455
    %v1457 = vpop.f32.mrb[0].mxu0
    %1458 = vmatprep.mubr.f32.mxu0 %v1152
    %1459 = vmatmul.mubr.f32.gmra.mrb[0].mxu0 %v1151
    %v1460 = vpop.f32.mrb[0].mxu0
    %v1461 = vadd.f32 %v1251, %v1460
    %v1462 = vpop.f32.mrb[0].mxu0
    %1463 = vmatprep.mubr.f32.mxu0 %v1154
    %1464 = vmatmul.mubr.f32.gmra.mrb[0].mxu0 %v1153
    %v1465 = vpop.f32.mrb[0].mxu0
    %v1466 = vadd.f32 %v1255, %v1465
    %v1467 = vpop.f32.mrb[0].mxu0
    %1468 = vmatprep.mubr.f32.mxu0 %v1156
    %1469 = vmatmul.mubr.f32.gmra.mrb[0].mxu0 %v1155
    %v1470 = vpop.f32.mrb[0].mxu0
    %v1471 = vadd.f32 %v1259, %v1470
    %v1472 = vpop.f32.mrb[0].mxu0
    %1473 = vmatprep.mubr.f32.mxu0 %v1158
    %1474 = vmatmul.mubr.f32.gmra.mrb[0].mxu0 %v1157
    %v1475 = vpop.f32.mrb[0].mxu0
    %v1476 = vadd.f32 %v1263, %v1475
    %v1477 = vpop.f32.mrb[0].mxu0
    %1478 = vmatprep.mubr.f32.mxu0 %v1160
    %1479 = vmatmul.mubr.f32.gmra.mrb[0].mxu0 %v1159
    %v1480 = vpop.f32.mrb[0].mxu0
    %v1481 = vadd.f32 %v1267, %v1480
    %v1482 = vpop.f32.mrb[0].mxu0
    %1483 = vmatprep.mubr.f32.mxu0 %v1162
    %1484 = vmatmul.mubr.f32.gmra.mrb[0].mxu0 %v1161
    %v1485 = vpop.f32.mrb[0].mxu0
    %v1486 = vadd.f32 %v1271, %v1485
    %v1487 = vpop.f32.mrb[0].mxu0
    %1488 = vmatprep.mubr.f32.mxu0 %v1164
    %1489 = vmatmul.mubr.f32.gmra.mrb[0].mxu0 %v1163
    %v1490 = vpop.f32.mrb[0].mxu0
    %v1491 = vadd.f32 %v1275, %v1490
    %v1492 = vpop.f32.mrb[0].mxu0
    %1493 = vmatprep.mubr.f32.mxu0 %v1166
    %1494 = vmatmul.mubr.f32.gmra.mrb[0].mxu0 %v1165
    %v1495 = vpop.f32.mrb[0].mxu0
    %v1496 = vadd.f32 %v1279, %v1495
    %v1497 = vpop.f32.mrb[0].mxu0
    %1498 = vmatprep.mubr.f32.mxu0 %v1168
    %1499 = vmatmul.mubr.f32.gmra.mrb[0].mxu0 %v1167
    %v1500 = vpop.f32.mrb[0].mxu0
    %v1501 = vadd.f32 %v1283, %v1500
    %v1502 = vpop.f32.mrb[0].mxu0
    %1503 = vmatprep.mubr.f32.mxu0 %v1170
    %1504 = vmatmul.mubr.f32.gmra.mrb[0].mxu0 %v1169
    %v1505 = vpop.f32.mrb[0].mxu0
    %v1506 = vadd.f32 %v1287, %v1505
    %v1507 = vpop.f32.mrb[0].mxu0
    %1508 = vmatprep.mubr.f32.mxu0 %v1172
    %1509 = vmatmul.mubr.f32.gmra.mrb[0].mxu0 %v1171
    %v1510 = vpop.f32.mrb[0].mxu0
    %v1511 = vadd.f32 %v1291, %v1510
    %v1512 = vpop.f32.mrb[0].mxu0
    %1513 = vmatprep.mubr.f32.mxu0 %v1174
    %1514 = vmatmul.mubr.f32.gmra.mrb[0].mxu0 %v1173
    %v1515 = vpop.f32.mrb[0].mxu0
    %v1516 = vadd.f32 %v1295, %v1515
    %v1517 = vpop.f32.mrb[0].mxu0
    %1518 = vmatprep.mubr.f32.mxu0 %v1176
    %1519 = vmatmul.mubr.f32.gmra.mrb[0].mxu0 %v1175
    %v1520 = vpop.f32.mrb[0].mxu0
    %v1521 = vadd.f32 %v1299, %v1520
    %v1522 = vpop.f32.mrb[0].mxu0
    %1523 = vmatprep.mubr.f32.mxu0 %v1178
    %1524 = vmatmul.mubr.f32.gmra.mrb[0].mxu0 %v1177
    %v1525 = vpop.f32.mrb[0].mxu0
    %v1526 = vadd.f32 %v1303, %v1525
    %v1527 = vpop.f32.mrb[0].mxu0
    %1528 = vmatprep.mubr.f32.mxu0 %v1180
    %1529 = vmatmul.mubr.f32.gmra.mrb[0].mxu0 %v1179
    %v1530 = vpop.f32.mrb[0].mxu0
    %v1531 = vadd.f32 %v1307, %v1530
    %v1532 = vpop.f32.mrb[0].mxu0
    %1533 = vdwg.mxu0
    %v1534 = vadd.f32 %v1376, %v636
    %v1535 = vadd.f32 %v1381, %v637
    %v1536 = vadd.f32 %v1386, %v638
    %v1537 = vadd.f32 %v1391, %v639
    %v1538 = vadd.f32 %v1396, %v640
    %v1539 = vadd.f32 %v1401, %v641
    %v1540 = vadd.f32 %v1406, %v642
    %v1541 = vadd.f32 %v1411, %v643
    %v1542 = vadd.f32 %v1416, %v644
    %v1543 = vadd.f32 %v1421, %v645
    %v1544 = vadd.f32 %v1426, %v646
    %v1545 = vadd.f32 %v1431, %v647
    %v1546 = vadd.f32 %v1436, %v648
    %v1547 = vadd.f32 %v1441, %v649
    %v1548 = vadd.f32 %v1446, %v650
    %v1549 = vadd.f32 %v1451, %v651
    %v1550 = vadd.f32 %v1456, %v652
    %v1551 = vadd.f32 %v1461, %v653
    %v1552 = vadd.f32 %v1466, %v654
    %v1553 = vadd.f32 %v1471, %v655
    %v1554 = vadd.f32 %v1476, %v656
    %v1555 = vadd.f32 %v1481, %v657
    %v1556 = vadd.f32 %v1486, %v658
    %v1557 = vadd.f32 %v1491, %v659
    %v1558 = vadd.f32 %v1496, %v660
    %v1559 = vadd.f32 %v1501, %v661
    %v1560 = vadd.f32 %v1506, %v662
    %v1561 = vadd.f32 %v1511, %v663
    %v1562 = vadd.f32 %v1516, %v664
    %v1563 = vadd.f32 %v1521, %v665
    %v1564 = vadd.f32 %v1526, %v666
    %v1565 = vadd.f32 %v1531, %v667
    %v1566 = vmax.f32 %v1534, 0.0
    %v1567 = vmax.f32 %v1535, 0.0
    %v1568 = vmax.f32 %v1536, 0.0
    %v1569 = vmax.f32 %v1537, 0.0
    %v1570 = vmax.f32 %v1538, 0.0
    %v1571 = vmax.f32 %v1539, 0.0
    %v1572 = vmax.f32 %v1540, 0.0
    %v1573 = vmax.f32 %v1541, 0.0
    %v1574 = vmax.f32 %v1542, 0.0
    %v1575 = vmax.f32 %v1543, 0.0
    %v1576 = vmax.f32 %v1544, 0.0
    %v1577 = vmax.f32 %v1545, 0.0
    %v1578 = vmax.f32 %v1546, 0.0
    %v1579 = vmax.f32 %v1547, 0.0
    %v1580 = vmax.f32 %v1548, 0.0
    %v1581 = vmax.f32 %v1549, 0.0
    %v1582 = vmax.f32 %v1550, 0.0
    %v1583 = vmax.f32 %v1551, 0.0
    %v1584 = vmax.f32 %v1552, 0.0
    %v1585 = vmax.f32 %v1553, 0.0
    %v1586 = vmax.f32 %v1554, 0.0
    %v1587 = vmax.f32 %v1555, 0.0
    %v1588 = vmax.f32 %v1556, 0.0
    %v1589 = vmax.f32 %v1557, 0.0
    %v1590 = vmax.f32 %v1558, 0.0
    %v1591 = vmax.f32 %v1559, 0.0
    %v1592 = vmax.f32 %v1560, 0.0
    %v1593 = vmax.f32 %v1561, 0.0
    %v1594 = vmax.f32 %v1562, 0.0
    %v1595 = vmax.f32 %v1563, 0.0
    %v1596 = vmax.f32 %v1564, 0.0
    %v1597 = vmax.f32 %v1565, 0.0
    %v1598 = vmax.f32 %v1566, %v1568
    %v1599 = vmax.f32 %v1567, %v1569
    %v1600 = vmax.f32 %v1570, %v1572
    %v1601 = vmax.f32 %v1571, %v1573
    %v1602 = vmax.f32 %v1574, %v1576
    %v1603 = vmax.f32 %v1575, %v1577
    %v1604 = vmax.f32 %v1578, %v1580
    %v1605 = vmax.f32 %v1579, %v1581
    %v1606 = vmax.f32 %v1582, %v1584
    %v1607 = vmax.f32 %v1583, %v1585
    %v1608 = vmax.f32 %v1586, %v1588
    %v1609 = vmax.f32 %v1587, %v1589
    %v1610 = vmax.f32 %v1590, %v1592
    %v1611 = vmax.f32 %v1591, %v1593
    %v1612 = vmax.f32 %v1594, %v1596
    %v1613 = vmax.f32 %v1595, %v1597
    %v1614 = vld [vmem:[#allocation5] sm:$0xff]
    %v1615 = vld [vmem:[#allocation5 + $0x8] sm:$0xff]
    %v1616 = vld [vmem:[#allocation5 + $0x10] sm:$0xff]
    %v1617 = vld [vmem:[#allocation5 + $0x18] sm:$0xff]
    %v1618 = vld [vmem:[#allocation5 + $0x20] sm:$0xff]
    %v1619 = vld [vmem:[#allocation5 + $0x28] sm:$0xff]
    %v1620 = vld [vmem:[#allocation5 + $0x30] sm:$0xff]
    %v1621 = vld [vmem:[#allocation5 + $0x38] sm:$0xff]
    %v1622 = vld [vmem:[#allocation5 + $0x40] sm:$0xff]
    %v1623 = vld [vmem:[#allocation5 + $0x48] sm:$0xff]
    %v1624 = vld [vmem:[#allocation5 + $0x50] sm:$0xff]
    %v1625 = vld [vmem:[#allocation5 + $0x58] sm:$0xff]
    %v1626 = vld [vmem:[#allocation5 + $0x60] sm:$0xff]
    %v1627 = vld [vmem:[#allocation5 + $0x68] sm:$0xff]
    %v1628 = vld [vmem:[#allocation5 + $0x70] sm:$0xff]
    %v1629 = vld [vmem:[#allocation5 + $0x78] sm:$0xff]
    %v1630 = vld [vmem:[#allocation5 + $0x80] sm:$0xff]
    %v1631 = vld [vmem:[#allocation5 + $0x88] sm:$0xff]
    %v1632 = vld [vmem:[#allocation5 + $0x90] sm:$0xff]
    %v1633 = vld [vmem:[#allocation5 + $0x98] sm:$0xff]
    %v1634 = vld [vmem:[#allocation5 + $0xa0] sm:$0xff]
    %v1635 = vld [vmem:[#allocation5 + $0xa8] sm:$0xff]
    %v1636 = vld [vmem:[#allocation5 + $0xb0] sm:$0xff]
    %v1637 = vld [vmem:[#allocation5 + $0xb8] sm:$0xff]
    %1638 = vset.pattern.permute.xlu0 3
    %1639 = vperm.xlu0 %1638, %v90
    %v1640 = vpop.permute.xlu0 %1639
    %1642 = vset.pattern.permute.xlu0 3
    %1643 = vperm.xlu0 %1642, %v91
    %v1644 = vpop.permute.xlu0 %1643
    %1646 = vset.pattern.permute.xlu0 3
    %1647 = vperm.xlu0 %1646, %v92
    %v1648 = vpop.permute.xlu0 %1647
    %1650 = vset.pattern.permute.xlu0 3
    %1651 = vperm.xlu0 %1650, %v93
    %v1652 = vpop.permute.xlu0 %1651
    %1654 = vset.pattern.permute.xlu0 3
    %1655 = vperm.xlu0 %1654, %v94
    %v1656 = vpop.permute.xlu0 %1655
    %1658 = vset.pattern.permute.xlu0 3
    %1659 = vperm.xlu0 %1658, %v95
    %v1660 = vpop.permute.xlu0 %1659
    %1662 = vset.pattern.permute.xlu0 3
    %1663 = vperm.xlu0 %1662, %v96
    %v1664 = vpop.permute.xlu0 %1663
    %1666 = vset.pattern.permute.xlu0 3
    %1667 = vperm.xlu0 %1666, %v97
    %v1668 = vpop.permute.xlu0 %1667
    %1670 = vset.pattern.permute.xlu0 3
    %1671 = vperm.xlu0 %1670, %v98
    %v1672 = vpop.permute.xlu0 %1671
    %1674 = vset.pattern.permute.xlu0 3
    %1675 = vperm.xlu0 %1674, %v99
    %v1676 = vpop.permute.xlu0 %1675
    %1678 = vset.pattern.permute.xlu0 3
    %1679 = vperm.xlu0 %1678, %v100
    %v1680 = vpop.permute.xlu0 %1679
    %1682 = vset.pattern.permute.xlu0 3
    %1683 = vperm.xlu0 %1682, %v101
    %v1684 = vpop.permute.xlu0 %1683
    %1686 = vset.pattern.permute.xlu0 3
    %1687 = vperm.xlu0 %1686, %v102
    %v1688 = vpop.permute.xlu0 %1687
    %1690 = vset.pattern.permute.xlu0 3
    %1691 = vperm.xlu0 %1690, %v103
    %v1692 = vpop.permute.xlu0 %1691
    %1694 = vset.pattern.permute.xlu0 3
    %1695 = vperm.xlu0 %1694, %v104
    %v1696 = vpop.permute.xlu0 %1695
    %1698 = vset.pattern.permute.xlu0 3
    %1699 = vperm.xlu0 %1698, %v105
    %v1700 = vpop.permute.xlu0 %1699
    %1702 = vset.pattern.permute.xlu0 3
    %1703 = vperm.xlu0 %1702, %v106
    %v1704 = vpop.permute.xlu0 %1703
    %1706 = vset.pattern.permute.xlu0 3
    %1707 = vperm.xlu0 %1706, %v107
    %v1708 = vpop.permute.xlu0 %1707
    %1710 = vset.pattern.permute.xlu0 3
    %1711 = vperm.xlu0 %1710, %v108
    %v1712 = vpop.permute.xlu0 %1711
    %1714 = vset.pattern.permute.xlu0 3
    %1715 = vperm.xlu0 %1714, %v109
    %v1716 = vpop.permute.xlu0 %1715
    %1718 = vset.pattern.permute.xlu0 3
    %1719 = vperm.xlu0 %1718, %v110
    %v1720 = vpop.permute.xlu0 %1719
    %1722 = vset.pattern.permute.xlu0 3
    %1723 = vperm.xlu0 %1722, %v111
    %v1724 = vpop.permute.xlu0 %1723
    %1726 = vset.pattern.permute.xlu0 3
    %1727 = vperm.xlu0 %1726, %v112
    %v1728 = vpop.permute.xlu0 %1727
    %1730 = vset.pattern.permute.xlu0 3
    %1731 = vperm.xlu0 %1730, %v113
    %v1732 = vpop.permute.xlu0 %1731
    %1734 = vmatprep.subr.mxu0 0.0
    %1735 = vmatpush1.msra.mxu0 %v1598
    %1736 = vmatprep.subr.mxu0 0.0
    %1737 = vmatpush1.msra.mxu0 %v1599
    %1738 = vmatprep.subr.mxu0 0.0
    %1739 = vmatpush1.msra.mxu0 %v1600
    %1740 = vmatprep.subr.mxu0 0.0
    %1741 = vmatpush1.msra.mxu0 %v1601
    %1742 = vmatprep.subr.mxu0 0.0
    %1743 = vmatpush1.msra.mxu0 %v1602
    %1744 = vmatprep.subr.mxu0 0.0
    %1745 = vmatpush1.msra.mxu0 %v1603
    %1746 = vmatprep.subr.mxu0 0.0
    %1747 = vmatpush1.msra.mxu0 %v1604
    %1748 = vmatprep.subr.mxu0 0.0
    %1749 = vmatpush1.msra.mxu0 %v1605
    %1750 = vmatprep.subr.mxu0 0.0
    %1751 = vmatpush1.msra.mxu0 %v1606
    %1752 = vmatprep.subr.mxu0 0.0
    %1753 = vmatpush1.msra.mxu0 %v1607
    %1754 = vmatprep.subr.mxu0 0.0
    %1755 = vmatpush1.msra.mxu0 %v1608
    %1756 = vmatprep.subr.mxu0 0.0
    %1757 = vmatpush1.msra.mxu0 %v1609
    %1758 = vmatprep.subr.mxu0 0.0
    %1759 = vmatpush1.msra.mxu0 %v1610
    %1760 = vmatprep.subr.mxu0 0.0
    %1761 = vmatpush1.msra.mxu0 %v1611
    %1762 = vmatprep.subr.mxu0 0.0
    %1763 = vmatpush1.msra.mxu0 %v1612
    %1764 = vmatprep.subr.mxu0 0.0
    %1765 = vmatpush1.msra.mxu0 %v1613
    %1766 = vmatprep.subr.mxu0 0.0
    %1767 = vmatpush1.msra.mxu0 0.0
    %1768 = vmatprep.subr.mxu0 0.0
    %1769 = vmatpush1.msra.mxu0 0.0
    %1770 = vmatprep.subr.mxu0 0.0
    %1771 = vmatpush1.msra.mxu0 0.0
    %1772 = vmatprep.subr.mxu0 0.0
    %1773 = vmatpush1.msra.mxu0 0.0
    %1774 = vmatprep.subr.mxu0 0.0
    %1775 = vmatpush1.msra.mxu0 0.0
    %1776 = vmatprep.subr.mxu0 0.0
    %1777 = vmatpush1.msra.mxu0 0.0
    %1778 = vmatprep.subr.mxu0 0.0
    %1779 = vmatpush1.msra.mxu0 0.0
    %1780 = vmatprep.subr.mxu0 0.0
    %1781 = vmatpush1.msra.mxu0 0.0
    %1782 = vmatprep.subr.mxu0 0.0
    %1783 = vmatpush1.msra.mxu0 0.0
    %1784 = vmatprep.subr.mxu0 0.0
    %1785 = vmatpush1.msra.mxu0 0.0
    %1786 = vmatprep.subr.mxu0 0.0
    %1787 = vmatpush1.msra.mxu0 0.0
    %1788 = vmatprep.subr.mxu0 0.0
    %1789 = vmatpush1.msra.mxu0 0.0
    %1790 = vmatprep.subr.mxu0 0.0
    %1791 = vmatpush1.msra.mxu0 0.0
    %1792 = vmatprep.subr.mxu0 0.0
    %1793 = vmatpush1.msra.mxu0 0.0
    %1794 = vmatprep.subr.mxu0 0.0
    %1795 = vmatpush1.msra.mxu0 0.0
    %1796 = vmatprep.subr.mxu0 0.0
    %1797 = vmatpush1.msra.mxu0 0.0
    %1798 = vmatprep.mubr.f32.mxu0 0.0
    %1799 = vmatmul.mubr.f32.gmra.mrb[0].mxu0 %v1614
    %v1800 = vpop.f32.mrb[0].mxu0
    %v1801 = vadd.f32 %v1640, %v1800
    %v1802 = vpop.f32.mrb[0].mxu0
    %1803 = vmatprep.mubr.f32.mxu0 0.0
    %1804 = vmatmul.mubr.f32.gmra.mrb[0].mxu0 %v1615
    %v1805 = vpop.f32.mrb[0].mxu0
    %v1806 = vadd.f32 %v1644, %v1805
    %v1807 = vpop.f32.mrb[0].mxu0
    %1808 = vmatprep.mubr.f32.mxu0 0.0
    %1809 = vmatmul.mubr.f32.gmra.mrb[0].mxu0 %v1616
    %v1810 = vpop.f32.mrb[0].mxu0
    %v1811 = vadd.f32 %v1648, %v1810
    %v1812 = vpop.f32.mrb[0].mxu0
    %1813 = vmatprep.mubr.f32.mxu0 0.0
    %1814 = vmatmul.mubr.f32.gmra.mrb[0].mxu0 %v1617
    %v1815 = vpop.f32.mrb[0].mxu0
    %v1816 = vadd.f32 %v1652, %v1815
    %v1817 = vpop.f32.mrb[0].mxu0
    %1818 = vmatprep.mubr.f32.mxu0 0.0
    %1819 = vmatmul.mubr.f32.gmra.mrb[0].mxu0 %v1618
    %v1820 = vpop.f32.mrb[0].mxu0
    %v1821 = vadd.f32 %v1656, %v1820
    %v1822 = vpop.f32.mrb[0].mxu0
    %1823 = vmatprep.mubr.f32.mxu0 0.0
    %1824 = vmatmul.mubr.f32.gmra.mrb[0].mxu0 %v1619
    %v1825 = vpop.f32.mrb[0].mxu0
    %v1826 = vadd.f32 %v1660, %v1825
    %v1827 = vpop.f32.mrb[0].mxu0
    %1828 = vmatprep.mubr.f32.mxu0 0.0
    %1829 = vmatmul.mubr.f32.gmra.mrb[0].mxu0 %v1620
    %v1830 = vpop.f32.mrb[0].mxu0
    %v1831 = vadd.f32 %v1664, %v1830
    %v1832 = vpop.f32.mrb[0].mxu0
    %1833 = vmatprep.mubr.f32.mxu0 0.0
    %1834 = vmatmul.mubr.f32.gmra.mrb[0].mxu0 %v1621
    %v1835 = vpop.f32.mrb[0].mxu0
    %v1836 = vadd.f32 %v1668, %v1835
    %v1837 = vpop.f32.mrb[0].mxu0
    %1838 = vmatprep.mubr.f32.mxu0 0.0
    %1839 = vmatmul.mubr.f32.gmra.mrb[0].mxu0 %v1622
    %v1840 = vpop.f32.mrb[0].mxu0
    %v1841 = vadd.f32 %v1672, %v1840
    %v1842 = vpop.f32.mrb[0].mxu0
    %1843 = vmatprep.mubr.f32.mxu0 0.0
    %1844 = vmatmul.mubr.f32.gmra.mrb[0].mxu0 %v1623
    %v1845 = vpop.f32.mrb[0].mxu0
    %v1846 = vadd.f32 %v1676, %v1845
    %v1847 = vpop.f32.mrb[0].mxu0
    %1848 = vmatprep.mubr.f32.mxu0 0.0
    %1849 = vmatmul.mubr.f32.gmra.mrb[0].mxu0 %v1624
    %v1850 = vpop.f32.mrb[0].mxu0
    %v1851 = vadd.f32 %v1680, %v1850
    %v1852 = vpop.f32.mrb[0].mxu0
    %1853 = vmatprep.mubr.f32.mxu0 0.0
    %1854 = vmatmul.mubr.f32.gmra.mrb[0].mxu0 %v1625
    %v1855 = vpop.f32.mrb[0].mxu0
    %v1856 = vadd.f32 %v1684, %v1855
    %v1857 = vpop.f32.mrb[0].mxu0
    %1858 = vmatprep.mubr.f32.mxu0 0.0
    %1859 = vmatmul.mubr.f32.gmra.mrb[0].mxu0 %v1626
    %v1860 = vpop.f32.mrb[0].mxu0
    %v1861 = vadd.f32 %v1688, %v1860
    %v1862 = vpop.f32.mrb[0].mxu0
    %1863 = vmatprep.mubr.f32.mxu0 0.0
    %1864 = vmatmul.mubr.f32.gmra.mrb[0].mxu0 %v1627
    %v1865 = vpop.f32.mrb[0].mxu0
    %v1866 = vadd.f32 %v1692, %v1865
    %v1867 = vpop.f32.mrb[0].mxu0
    %1868 = vmatprep.mubr.f32.mxu0 0.0
    %1869 = vmatmul.mubr.f32.gmra.mrb[0].mxu0 %v1628
    %v1870 = vpop.f32.mrb[0].mxu0
    %v1871 = vadd.f32 %v1696, %v1870
    %v1872 = vpop.f32.mrb[0].mxu0
    %1873 = vmatprep.mubr.f32.mxu0 0.0
    %1874 = vmatmul.mubr.f32.gmra.mrb[0].mxu0 %v1629
    %v1875 = vpop.f32.mrb[0].mxu0
    %v1876 = vadd.f32 %v1700, %v1875
    %v1877 = vpop.f32.mrb[0].mxu0
    %1878 = vmatprep.mubr.f32.mxu0 0.0
    %1879 = vmatmul.mubr.f32.gmra.mrb[0].mxu0 %v1630
    %v1880 = vpop.f32.mrb[0].mxu0
    %v1881 = vadd.f32 %v1704, %v1880
    %v1882 = vpop.f32.mrb[0].mxu0
    %1883 = vmatprep.mubr.f32.mxu0 0.0
    %1884 = vmatmul.mubr.f32.gmra.mrb[0].mxu0 %v1631
    %v1885 = vpop.f32.mrb[0].mxu0
    %v1886 = vadd.f32 %v1708, %v1885
    %v1887 = vpop.f32.mrb[0].mxu0
    %1888 = vmatprep.mubr.f32.mxu0 0.0
    %1889 = vmatmul.mubr.f32.gmra.mrb[0].mxu0 %v1632
    %v1890 = vpop.f32.mrb[0].mxu0
    %v1891 = vadd.f32 %v1712, %v1890
    %v1892 = vpop.f32.mrb[0].mxu0
    %1893 = vmatprep.mubr.f32.mxu0 0.0
    %1894 = vmatmul.mubr.f32.gmra.mrb[0].mxu0 %v1633
    %v1895 = vpop.f32.mrb[0].mxu0
    %v1896 = vadd.f32 %v1716, %v1895
    %v1897 = vpop.f32.mrb[0].mxu0
    %1898 = vmatprep.mubr.f32.mxu0 0.0
    %1899 = vmatmul.mubr.f32.gmra.mrb[0].mxu0 %v1634
    %v1900 = vpop.f32.mrb[0].mxu0
    %v1901 = vadd.f32 %v1720, %v1900
    %v1902 = vpop.f32.mrb[0].mxu0
    %1903 = vmatprep.mubr.f32.mxu0 0.0
    %1904 = vmatmul.mubr.f32.gmra.mrb[0].mxu0 %v1635
    %v1905 = vpop.f32.mrb[0].mxu0
    %v1906 = vadd.f32 %v1724, %v1905
    %v1907 = vpop.f32.mrb[0].mxu0
    %1908 = vmatprep.mubr.f32.mxu0 0.0
    %1909 = vmatmul.mubr.f32.gmra.mrb[0].mxu0 %v1636
    %v1910 = vpop.f32.mrb[0].mxu0
    %v1911 = vadd.f32 %v1728, %v1910
    %v1912 = vpop.f32.mrb[0].mxu0
    %1913 = vmatprep.mubr.f32.mxu0 0.0
    %1914 = vmatmul.mubr.f32.gmra.mrb[0].mxu0 %v1637
    %v1915 = vpop.f32.mrb[0].mxu0
    %v1916 = vadd.f32 %v1732, %v1915
    %v1917 = vpop.f32.mrb[0].mxu0
    %1918 = vdwg.mxu0
    %v1919 = vld [vmem:[#allocation7] sm:$0xff]
    %v1920 = vld [vmem:[#allocation7 + $0x8] sm:$0xff]
    %v1921 = vld [vmem:[#allocation7 + $0x10] sm:$0xff]
    %v1922 = vld [vmem:[#allocation7 + $0x18] sm:$0xff]
    %v1923 = vld [vmem:[#allocation7 + $0x20] sm:$0xff]
    %v1924 = vld [vmem:[#allocation7 + $0x28] sm:$0xff]
    %v1925 = vld [vmem:[#allocation7 + $0x30] sm:$0xff]
    %v1926 = vld [vmem:[#allocation7 + $0x38] sm:$0xff]
    %v1927 = vld [vmem:[#allocation7 + $0x40] sm:$0xff]
    %v1928 = vld [vmem:[#allocation7 + $0x48] sm:$0xff]
    %v1929 = vld [vmem:[#allocation7 + $0x50] sm:$0xff]
    %v1930 = vld [vmem:[#allocation7 + $0x58] sm:$0xff]
    %v1931 = vld [vmem:[#allocation7 + $0x60] sm:$0xff]
    %v1932 = vld [vmem:[#allocation7 + $0x68] sm:$0xff]
    %v1933 = vld [vmem:[#allocation7 + $0x70] sm:$0xff]
    %v1934 = vld [vmem:[#allocation7 + $0x78] sm:$0xff]
    %v1935 = vld [vmem:[#allocation7 + $0x80] sm:$0xff]
    %v1936 = vld [vmem:[#allocation7 + $0x88] sm:$0xff]
    %v1937 = vld [vmem:[#allocation7 + $0x90] sm:$0xff]
    %v1938 = vld [vmem:[#allocation7 + $0x98] sm:$0xff]
    %v1939 = vld [vmem:[#allocation7 + $0xa0] sm:$0xff]
    %v1940 = vld [vmem:[#allocation7 + $0xa8] sm:$0xff]
    %v1941 = vld [vmem:[#allocation7 + $0xb0] sm:$0xff]
    %v1942 = vld [vmem:[#allocation7 + $0xb8] sm:$0xff]
    %1943 = vset.pattern.permute.xlu0 4
    %1944 = vperm.xlu0 %1943, %v90
    %v1945 = vpop.permute.xlu0 %1944
    %1947 = vset.pattern.permute.xlu0 4
    %1948 = vperm.xlu0 %1947, %v91
    %v1949 = vpop.permute.xlu0 %1948
    %1951 = vset.pattern.permute.xlu0 4
    %1952 = vperm.xlu0 %1951, %v92
    %v1953 = vpop.permute.xlu0 %1952
    %1955 = vset.pattern.permute.xlu0 4
    %1956 = vperm.xlu0 %1955, %v93
    %v1957 = vpop.permute.xlu0 %1956
    %1959 = vset.pattern.permute.xlu0 4
    %1960 = vperm.xlu0 %1959, %v94
    %v1961 = vpop.permute.xlu0 %1960
    %1963 = vset.pattern.permute.xlu0 4
    %1964 = vperm.xlu0 %1963, %v95
    %v1965 = vpop.permute.xlu0 %1964
    %1967 = vset.pattern.permute.xlu0 4
    %1968 = vperm.xlu0 %1967, %v96
    %v1969 = vpop.permute.xlu0 %1968
    %1971 = vset.pattern.permute.xlu0 4
    %1972 = vperm.xlu0 %1971, %v97
    %v1973 = vpop.permute.xlu0 %1972
    %1975 = vset.pattern.permute.xlu0 4
    %1976 = vperm.xlu0 %1975, %v98
    %v1977 = vpop.permute.xlu0 %1976
    %1979 = vset.pattern.permute.xlu0 4
    %1980 = vperm.xlu0 %1979, %v99
    %v1981 = vpop.permute.xlu0 %1980
    %1983 = vset.pattern.permute.xlu0 4
    %1984 = vperm.xlu0 %1983, %v100
    %v1985 = vpop.permute.xlu0 %1984
    %1987 = vset.pattern.permute.xlu0 4
    %1988 = vperm.xlu0 %1987, %v101
    %v1989 = vpop.permute.xlu0 %1988
    %1991 = vset.pattern.permute.xlu0 4
    %1992 = vperm.xlu0 %1991, %v102
    %v1993 = vpop.permute.xlu0 %1992
    %1995 = vset.pattern.permute.xlu0 4
    %1996 = vperm.xlu0 %1995, %v103
    %v1997 = vpop.permute.xlu0 %1996
    %1999 = vset.pattern.permute.xlu0 4
    %2000 = vperm.xlu0 %1999, %v104
    %v2001 = vpop.permute.xlu0 %2000
    %2003 = vset.pattern.permute.xlu0 4
    %2004 = vperm.xlu0 %2003, %v105
    %v2005 = vpop.permute.xlu0 %2004
    %2007 = vset.pattern.permute.xlu0 4
    %2008 = vperm.xlu0 %2007, %v106
    %v2009 = vpop.permute.xlu0 %2008
    %2011 = vset.pattern.permute.xlu0 4
    %2012 = vperm.xlu0 %2011, %v107
    %v2013 = vpop.permute.xlu0 %2012
    %2015 = vset.pattern.permute.xlu0 4
    %2016 = vperm.xlu0 %2015, %v108
    %v2017 = vpop.permute.xlu0 %2016
    %2019 = vset.pattern.permute.xlu0 4
    %2020 = vperm.xlu0 %2019, %v109
    %v2021 = vpop.permute.xlu0 %2020
    %2023 = vset.pattern.permute.xlu0 4
    %2024 = vperm.xlu0 %2023, %v110
    %v2025 = vpop.permute.xlu0 %2024
    %2027 = vset.pattern.permute.xlu0 4
    %2028 = vperm.xlu0 %2027, %v111
    %v2029 = vpop.permute.xlu0 %2028
    %2031 = vset.pattern.permute.xlu0 4
    %2032 = vperm.xlu0 %2031, %v112
    %v2033 = vpop.permute.xlu0 %2032
    %2035 = vset.pattern.permute.xlu0 4
    %2036 = vperm.xlu0 %2035, %v113
    %v2037 = vpop.permute.xlu0 %2036
    %2039 = vmatprep.subr.mxu0 0.0
    %2040 = vmatpush1.msra.mxu0 %v1598
    %2041 = vmatprep.subr.mxu0 0.0
    %2042 = vmatpush1.msra.mxu0 %v1599
    %2043 = vmatprep.subr.mxu0 0.0
    %2044 = vmatpush1.msra.mxu0 %v1600
    %2045 = vmatprep.subr.mxu0 0.0
    %2046 = vmatpush1.msra.mxu0 %v1601
    %2047 = vmatprep.subr.mxu0 0.0
    %2048 = vmatpush1.msra.mxu0 %v1602
    %2049 = vmatprep.subr.mxu0 0.0
    %2050 = vmatpush1.msra.mxu0 %v1603
    %2051 = vmatprep.subr.mxu0 0.0
    %2052 = vmatpush1.msra.mxu0 %v1604
    %2053 = vmatprep.subr.mxu0 0.0
    %2054 = vmatpush1.msra.mxu0 %v1605
    %2055 = vmatprep.subr.mxu0 0.0
    %2056 = vmatpush1.msra.mxu0 %v1606
    %2057 = vmatprep.subr.mxu0 0.0
    %2058 = vmatpush1.msra.mxu0 %v1607
    %2059 = vmatprep.subr.mxu0 0.0
    %2060 = vmatpush1.msra.mxu0 %v1608
    %2061 = vmatprep.subr.mxu0 0.0
    %2062 = vmatpush1.msra.mxu0 %v1609
    %2063 = vmatprep.subr.mxu0 0.0
    %2064 = vmatpush1.msra.mxu0 %v1610
    %2065 = vmatprep.subr.mxu0 0.0
    %2066 = vmatpush1.msra.mxu0 %v1611
    %2067 = vmatprep.subr.mxu0 0.0
    %2068 = vmatpush1.msra.mxu0 %v1612
    %2069 = vmatprep.subr.mxu0 0.0
    %2070 = vmatpush1.msra.mxu0 %v1613
    %2071 = vmatprep.subr.mxu0 0.0
    %2072 = vmatpush1.msra.mxu0 0.0
    %2073 = vmatprep.subr.mxu0 0.0
    %2074 = vmatpush1.msra.mxu0 0.0
    %2075 = vmatprep.subr.mxu0 0.0
    %2076 = vmatpush1.msra.mxu0 0.0
    %2077 = vmatprep.subr.mxu0 0.0
    %2078 = vmatpush1.msra.mxu0 0.0
    %2079 = vmatprep.subr.mxu0 0.0
    %2080 = vmatpush1.msra.mxu0 0.0
    %2081 = vmatprep.subr.mxu0 0.0
    %2082 = vmatpush1.msra.mxu0 0.0
    %2083 = vmatprep.subr.mxu0 0.0
    %2084 = vmatpush1.msra.mxu0 0.0
    %2085 = vmatprep.subr.mxu0 0.0
    %2086 = vmatpush1.msra.mxu0 0.0
    %2087 = vmatprep.subr.mxu0 0.0
    %2088 = vmatpush1.msra.mxu0 0.0
    %2089 = vmatprep.subr.mxu0 0.0
    %2090 = vmatpush1.msra.mxu0 0.0
    %2091 = vmatprep.subr.mxu0 0.0
    %2092 = vmatpush1.msra.mxu0 0.0
    %2093 = vmatprep.subr.mxu0 0.0
    %2094 = vmatpush1.msra.mxu0 0.0
    %2095 = vmatprep.subr.mxu0 0.0
    %2096 = vmatpush1.msra.mxu0 0.0
    %2097 = vmatprep.subr.mxu0 0.0
    %2098 = vmatpush1.msra.mxu0 0.0
    %2099 = vmatprep.subr.mxu0 0.0
    %2100 = vmatpush1.msra.mxu0 0.0
    %2101 = vmatprep.subr.mxu0 0.0
    %2102 = vmatpush1.msra.mxu0 0.0
    %2103 = vmatprep.mubr.f32.mxu0 0.0
    %2104 = vmatmul.mubr.f32.gmra.mrb[0].mxu0 %v1919
    %v2105 = vpop.f32.mrb[0].mxu0
    %v2106 = vadd.f32 %v1945, %v2105
    %v2107 = vpop.f32.mrb[0].mxu0
    %2108 = vmatprep.mubr.f32.mxu0 0.0
    %2109 = vmatmul.mubr.f32.gmra.mrb[0].mxu0 %v1920
    %v2110 = vpop.f32.mrb[0].mxu0
    %v2111 = vadd.f32 %v1949, %v2110
    %v2112 = vpop.f32.mrb[0].mxu0
    %2113 = vmatprep.mubr.f32.mxu0 0.0
    %2114 = vmatmul.mubr.f32.gmra.mrb[0].mxu0 %v1921
    %v2115 = vpop.f32.mrb[0].mxu0
    %v2116 = vadd.f32 %v1953, %v2115
    %v2117 = vpop.f32.mrb[0].mxu0
    %2118 = vmatprep.mubr.f32.mxu0 0.0
    %2119 = vmatmul.mubr.f32.gmra.mrb[0].mxu0 %v1922
    %v2120 = vpop.f32.mrb[0].mxu0
    %v2121 = vadd.f32 %v1957, %v2120
    %v2122 = vpop.f32.mrb[0].mxu0
    %2123 = vmatprep.mubr.f32.mxu0 0.0
    %2124 = vmatmul.mubr.f32.gmra.mrb[0].mxu0 %v1923
    %v2125 = vpop.f32.mrb[0].mxu0
    %v2126 = vadd.f32 %v1961, %v2125
    %v2127 = vpop.f32.mrb[0].mxu0
    %2128 = vmatprep.mubr.f32.mxu0 0.0
    %2129 = vmatmul.mubr.f32.gmra.mrb[0].mxu0 %v1924
    %v2130 = vpop.f32.mrb[0].mxu0
    %v2131 = vadd.f32 %v1965, %v2130
    %v2132 = vpop.f32.mrb[0].mxu0
    %2133 = vmatprep.mubr.f32.mxu0 0.0
    %2134 = vmatmul.mubr.f32.gmra.mrb[0].mxu0 %v1925
    %v2135 = vpop.f32.mrb[0].mxu0
    %v2136 = vadd.f32 %v1969, %v2135
    %v2137 = vpop.f32.mrb[0].mxu0
    %2138 = vmatprep.mubr.f32.mxu0 0.0
    %2139 = vmatmul.mubr.f32.gmra.mrb[0].mxu0 %v1926
    %v2140 = vpop.f32.mrb[0].mxu0
    %v2141 = vadd.f32 %v1973, %v2140
    %v2142 = vpop.f32.mrb[0].mxu0
    %2143 = vmatprep.mubr.f32.mxu0 0.0
    %2144 = vmatmul.mubr.f32.gmra.mrb[0].mxu0 %v1927
    %v2145 = vpop.f32.mrb[0].mxu0
    %v2146 = vadd.f32 %v1977, %v2145
    %v2147 = vpop.f32.mrb[0].mxu0
    %2148 = vmatprep.mubr.f32.mxu0 0.0
    %2149 = vmatmul.mubr.f32.gmra.mrb[0].mxu0 %v1928
    %v2150 = vpop.f32.mrb[0].mxu0
    %v2151 = vadd.f32 %v1981, %v2150
    %v2152 = vpop.f32.mrb[0].mxu0
    %2153 = vmatprep.mubr.f32.mxu0 0.0
    %2154 = vmatmul.mubr.f32.gmra.mrb[0].mxu0 %v1929
    %v2155 = vpop.f32.mrb[0].mxu0
    %v2156 = vadd.f32 %v1985, %v2155
    %v2157 = vpop.f32.mrb[0].mxu0
    %2158 = vmatprep.mubr.f32.mxu0 0.0
    %2159 = vmatmul.mubr.f32.gmra.mrb[0].mxu0 %v1930
    %v2160 = vpop.f32.mrb[0].mxu0
    %v2161 = vadd.f32 %v1989, %v2160
    %v2162 = vpop.f32.mrb[0].mxu0
    %2163 = vmatprep.mubr.f32.mxu0 0.0
    %2164 = vmatmul.mubr.f32.gmra.mrb[0].mxu0 %v1931
    %v2165 = vpop.f32.mrb[0].mxu0
    %v2166 = vadd.f32 %v1993, %v2165
    %v2167 = vpop.f32.mrb[0].mxu0
    %2168 = vmatprep.mubr.f32.mxu0 0.0
    %2169 = vmatmul.mubr.f32.gmra.mrb[0].mxu0 %v1932
    %v2170 = vpop.f32.mrb[0].mxu0
    %v2171 = vadd.f32 %v1997, %v2170
    %v2172 = vpop.f32.mrb[0].mxu0
    %2173 = vmatprep.mubr.f32.mxu0 0.0
    %2174 = vmatmul.mubr.f32.gmra.mrb[0].mxu0 %v1933
    %v2175 = vpop.f32.mrb[0].mxu0
    %v2176 = vadd.f32 %v2001, %v2175
    %v2177 = vpop.f32.mrb[0].mxu0
    %2178 = vmatprep.mubr.f32.mxu0 0.0
    %2179 = vmatmul.mubr.f32.gmra.mrb[0].mxu0 %v1934
    %v2180 = vpop.f32.mrb[0].mxu0
    %v2181 = vadd.f32 %v2005, %v2180
    %v2182 = vpop.f32.mrb[0].mxu0
    %2183 = vmatprep.mubr.f32.mxu0 0.0
    %2184 = vmatmul.mubr.f32.gmra.mrb[0].mxu0 %v1935
    %v2185 = vpop.f32.mrb[0].mxu0
    %v2186 = vadd.f32 %v2009, %v2185
    %v2187 = vpop.f32.mrb[0].mxu0
    %2188 = vmatprep.mubr.f32.mxu0 0.0
    %2189 = vmatmul.mubr.f32.gmra.mrb[0].mxu0 %v1936
    %v2190 = vpop.f32.mrb[0].mxu0
    %v2191 = vadd.f32 %v2013, %v2190
    %v2192 = vpop.f32.mrb[0].mxu0
    %2193 = vmatprep.mubr.f32.mxu0 0.0
    %2194 = vmatmul.mubr.f32.gmra.mrb[0].mxu0 %v1937
    %v2195 = vpop.f32.mrb[0].mxu0
    %v2196 = vadd.f32 %v2017, %v2195
    %v2197 = vpop.f32.mrb[0].mxu0
    %2198 = vmatprep.mubr.f32.mxu0 0.0
    %2199 = vmatmul.mubr.f32.gmra.mrb[0].mxu0 %v1938
    %v2200 = vpop.f32.mrb[0].mxu0
    %v2201 = vadd.f32 %v2021, %v2200
    %v2202 = vpop.f32.mrb[0].mxu0
    %2203 = vmatprep.mubr.f32.mxu0 0.0
    %2204 = vmatmul.mubr.f32.gmra.mrb[0].mxu0 %v1939
    %v2205 = vpop.f32.mrb[0].mxu0
    %v2206 = vadd.f32 %v2025, %v2205
    %v2207 = vpop.f32.mrb[0].mxu0
    %2208 = vmatprep.mubr.f32.mxu0 0.0
    %2209 = vmatmul.mubr.f32.gmra.mrb[0].mxu0 %v1940
    %v2210 = vpop.f32.mrb[0].mxu0
    %v2211 = vadd.f32 %v2029, %v2210
    %v2212 = vpop.f32.mrb[0].mxu0
    %2213 = vmatprep.mubr.f32.mxu0 0.0
    %2214 = vmatmul.mubr.f32.gmra.mrb[0].mxu0 %v1941
    %v2215 = vpop.f32.mrb[0].mxu0
    %v2216 = vadd.f32 %v2033, %v2215
    %v2217 = vpop.f32.mrb[0].mxu0
    %2218 = vmatprep.mubr.f32.mxu0 0.0
    %2219 = vmatmul.mubr.f32.gmra.mrb[0].mxu0 %v1942
    %v2220 = vpop.f32.mrb[0].mxu0
    %v2221 = vadd.f32 %v2037, %v2220
    %v2222 = vpop.f32.mrb[0].mxu0
    %2223 = vdwg.mxu0
    %v2224 = vmax.f32 %v2106, 0.0
    %v2225 = vmax.f32 %v2111, 0.0
    %v2226 = vmax.f32 %v2116, 0.0
    %v2227 = vmax.f32 %v2121, 0.0
    %v2228 = vmax.f32 %v2126, 0.0
    %v2229 = vmax.f32 %v2131, 0.0
    %v2230 = vmax.f32 %v2136, 0.0
    %v2231 = vmax.f32 %v2141, 0.0
    %v2232 = vmax.f32 %v2146, 0.0
    %v2233 = vmax.f32 %v2151, 0.0
    %v2234 = vmax.f32 %v2156, 0.0
    %v2235 = vmax.f32 %v2161, 0.0
    %v2236 = vmax.f32 %v2166, 0.0
    %v2237 = vmax.f32 %v2171, 0.0
    %v2238 = vmax.f32 %v2176, 0.0
    %v2239 = vmax.f32 %v2181, 0.0
    %v2240 = vmax.f32 %v2186, 0.0
    %v2241 = vmax.f32 %v2191, 0.0
    %v2242 = vmax.f32 %v2196, 0.0
    %v2243 = vmax.f32 %v2201, 0.0
    %v2244 = vmax.f32 %v2206, 0.0
    %v2245 = vmax.f32 %v2211, 0.0
    %v2246 = vmax.f32 %v2216, 0.0
    %v2247 = vmax.f32 %v2221, 0.0
    %v2248 = vld [vmem:[#allocation8] sm:$0xff]
    %v2249 = vld [vmem:[#allocation8 + $0x8] sm:$0xff]
    %v2250 = vld [vmem:[#allocation8 + $0x10] sm:$0xff]
    %v2251 = vld [vmem:[#allocation8 + $0x18] sm:$0xff]
    %v2252 = vld [vmem:[#allocation8 + $0x20] sm:$0xff]
    %v2253 = vld [vmem:[#allocation8 + $0x28] sm:$0xff]
    %v2254 = vld [vmem:[#allocation8 + $0x30] sm:$0xff]
    %v2255 = vld [vmem:[#allocation8 + $0x38] sm:$0xff]
    %v2256 = vld [vmem:[#allocation8 + $0x40] sm:$0xff]
    %v2257 = vld [vmem:[#allocation8 + $0x48] sm:$0xff]
    %v2258 = vld [vmem:[#allocation8 + $0x50] sm:$0xff]
    %v2259 = vld [vmem:[#allocation8 + $0x58] sm:$0xff]
    %v2260 = vld [vmem:[#allocation8 + $0x60] sm:$0xff]
    %v2261 = vld [vmem:[#allocation8 + $0x68] sm:$0xff]
    %v2262 = vld [vmem:[#allocation8 + $0x70] sm:$0xff]
    %v2263 = vld [vmem:[#allocation8 + $0x78] sm:$0xff]
    %v2264 = vld [vmem:[#allocation8 + $0x80] sm:$0xff]
    %v2265 = vld [vmem:[#allocation8 + $0x88] sm:$0xff]
    %v2266 = vld [vmem:[#allocation8 + $0x90] sm:$0xff]
    %v2267 = vld [vmem:[#allocation8 + $0x98] sm:$0xff]
    %v2268 = vld [vmem:[#allocation8 + $0xa0] sm:$0xff]
    %v2269 = vld [vmem:[#allocation8 + $0xa8] sm:$0xff]
    %v2270 = vld [vmem:[#allocation8 + $0xb0] sm:$0xff]
    %v2271 = vld [vmem:[#allocation8 + $0xb8] sm:$0xff]
    %v2272 = vld [vmem:[#allocation8 + $0xc0] sm:$0xff]
    %v2273 = vld [vmem:[#allocation8 + $0xc8] sm:$0xff]
    %v2274 = vld [vmem:[#allocation8 + $0xd0] sm:$0xff]
    %v2275 = vld [vmem:[#allocation8 + $0xd8] sm:$0xff]
    %v2276 = vld [vmem:[#allocation8 + $0xe0] sm:$0xff]
    %v2277 = vld [vmem:[#allocation8 + $0xe8] sm:$0xff]
    %v2278 = vld [vmem:[#allocation8 + $0xf0] sm:$0xff]
    %v2279 = vld [vmem:[#allocation8 + $0xf8] sm:$0xff]
    %v2280 = vld [vmem:[#allocation8 + $0x100] sm:$0xff]
    %v2281 = vld [vmem:[#allocation8 + $0x108] sm:$0xff]
    %v2282 = vld [vmem:[#allocation8 + $0x110] sm:$0xff]
    %v2283 = vld [vmem:[#allocation8 + $0x118] sm:$0xff]
    %v2284 = vld [vmem:[#allocation8 + $0x120] sm:$0xff]
    %v2285 = vld [vmem:[#allocation8 + $0x128] sm:$0xff]
    %v2286 = vld [vmem:[#allocation8 + $0x130] sm:$0xff]
    %v2287 = vld [vmem:[#allocation8 + $0x138] sm:$0xff]
    %v2288 = vld [vmem:[#allocation8 + $0x140] sm:$0xff]
    %v2289 = vld [vmem:[#allocation8 + $0x148] sm:$0xff]
    %v2290 = vld [vmem:[#allocation8 + $0x150] sm:$0xff]
    %v2291 = vld [vmem:[#allocation8 + $0x158] sm:$0xff]
    %v2292 = vld [vmem:[#allocation8 + $0x160] sm:$0xff]
    %v2293 = vld [vmem:[#allocation8 + $0x168] sm:$0xff]
    %v2294 = vld [vmem:[#allocation8 + $0x170] sm:$0xff]
    %v2295 = vld [vmem:[#allocation8 + $0x178] sm:$0xff]
    %2296 = vset.pattern.permute.xlu0 5
    %2297 = vperm.xlu0 %2296, %v90
    %v2298 = vpop.permute.xlu0 %2297
    %2300 = vset.pattern.permute.xlu0 5
    %2301 = vperm.xlu0 %2300, %v91
    %v2302 = vpop.permute.xlu0 %2301
    %2304 = vset.pattern.permute.xlu0 5
    %2305 = vperm.xlu0 %2304, %v92
    %v2306 = vpop.permute.xlu0 %2305
    %2308 = vset.pattern.permute.xlu0 5
    %2309 = vperm.xlu0 %2308, %v93
    %v2310 = vpop.permute.xlu0 %2309
    %2312 = vset.pattern.permute.xlu0 5
    %2313 = vperm.xlu0 %2312, %v94
    %v2314 = vpop.permute.xlu0 %2313
    %2316 = vset.pattern.permute.xlu0 5
    %2317 = vperm.xlu0 %2316, %v95
    %v2318 = vpop.permute.xlu0 %2317
    %2320 = vset.pattern.permute.xlu0 5
    %2321 = vperm.xlu0 %2320, %v96
    %v2322 = vpop.permute.xlu0 %2321
    %2324 = vset.pattern.permute.xlu0 5
    %2325 = vperm.xlu0 %2324, %v97
    %v2326 = vpop.permute.xlu0 %2325
    %2328 = vset.pattern.permute.xlu0 5
    %2329 = vperm.xlu0 %2328, %v98
    %v2330 = vpop.permute.xlu0 %2329
    %2332 = vset.pattern.permute.xlu0 5
    %2333 = vperm.xlu0 %2332, %v99
    %v2334 = vpop.permute.xlu0 %2333
    %2336 = vset.pattern.permute.xlu0 5
    %2337 = vperm.xlu0 %2336, %v100
    %v2338 = vpop.permute.xlu0 %2337
    %2340 = vset.pattern.permute.xlu0 5
    %2341 = vperm.xlu0 %2340, %v101
    %v2342 = vpop.permute.xlu0 %2341
    %2344 = vset.pattern.permute.xlu0 5
    %2345 = vperm.xlu0 %2344, %v102
    %v2346 = vpop.permute.xlu0 %2345
    %2348 = vset.pattern.permute.xlu0 5
    %2349 = vperm.xlu0 %2348, %v103
    %v2350 = vpop.permute.xlu0 %2349
    %2352 = vset.pattern.permute.xlu0 5
    %2353 = vperm.xlu0 %2352, %v104
    %v2354 = vpop.permute.xlu0 %2353
    %2356 = vset.pattern.permute.xlu0 5
    %2357 = vperm.xlu0 %2356, %v105
    %v2358 = vpop.permute.xlu0 %2357
    %2360 = vset.pattern.permute.xlu0 5
    %2361 = vperm.xlu0 %2360, %v106
    %v2362 = vpop.permute.xlu0 %2361
    %2364 = vset.pattern.permute.xlu0 5
    %2365 = vperm.xlu0 %2364, %v107
    %v2366 = vpop.permute.xlu0 %2365
    %2368 = vset.pattern.permute.xlu0 5
    %2369 = vperm.xlu0 %2368, %v108
    %v2370 = vpop.permute.xlu0 %2369
    %2372 = vset.pattern.permute.xlu0 5
    %2373 = vperm.xlu0 %2372, %v109
    %v2374 = vpop.permute.xlu0 %2373
    %2376 = vset.pattern.permute.xlu0 5
    %2377 = vperm.xlu0 %2376, %v110
    %v2378 = vpop.permute.xlu0 %2377
    %2380 = vset.pattern.permute.xlu0 5
    %2381 = vperm.xlu0 %2380, %v111
    %v2382 = vpop.permute.xlu0 %2381
    %2384 = vset.pattern.permute.xlu0 5
    %2385 = vperm.xlu0 %2384, %v112
    %v2386 = vpop.permute.xlu0 %2385
    %2388 = vset.pattern.permute.xlu0 5
    %2389 = vperm.xlu0 %2388, %v113
    %v2390 = vpop.permute.xlu0 %2389
    %vm2392 = vcmask 523264
    %v2394 = vsel %vm2392, %v2249, 0
    %v2397 = vsel %vm2392, %v2251, 0
    %v2400 = vsel %vm2392, %v2253, 0
    %v2403 = vsel %vm2392, %v2255, 0
    %v2406 = vsel %vm2392, %v2257, 0
    %v2409 = vsel %vm2392, %v2259, 0
    %v2412 = vsel %vm2392, %v2261, 0
    %v2415 = vsel %vm2392, %v2263, 0
    %v2418 = vsel %vm2392, %v2265, 0
    %v2421 = vsel %vm2392, %v2267, 0
    %v2424 = vsel %vm2392, %v2269, 0
    %v2427 = vsel %vm2392, %v2271, 0
    %v2430 = vsel %vm2392, %v2273, 0
    %v2433 = vsel %vm2392, %v2275, 0
    %v2436 = vsel %vm2392, %v2277, 0
    %v2439 = vsel %vm2392, %v2279, 0
    %v2442 = vsel %vm2392, %v2281, 0
    %v2445 = vsel %vm2392, %v2283, 0
    %v2448 = vsel %vm2392, %v2285, 0
    %v2451 = vsel %vm2392, %v2287, 0
    %v2454 = vsel %vm2392, %v2289, 0
    %v2457 = vsel %vm2392, %v2291, 0
    %v2460 = vsel %vm2392, %v2293, 0
    %v2463 = vsel %vm2392, %v2295, 0
    %2465 = vmatprep.subr.mxu0 0.0
    %2466 = vmatpush1.msra.mxu0 %v2224
    %2467 = vmatprep.subr.mxu0 0.0
    %2468 = vmatpush1.msra.mxu0 %v2225
    %2469 = vmatprep.subr.mxu0 0.0
    %2470 = vmatpush1.msra.mxu0 %v2226
    %2471 = vmatprep.subr.mxu0 0.0
    %2472 = vmatpush1.msra.mxu0 %v2227
    %2473 = vmatprep.subr.mxu0 0.0
    %2474 = vmatpush1.msra.mxu0 %v2228
    %2475 = vmatprep.subr.mxu0 0.0
    %2476 = vmatpush1.msra.mxu0 %v2229
    %2477 = vmatprep.subr.mxu0 0.0
    %2478 = vmatpush1.msra.mxu0 %v2230
    %2479 = vmatprep.subr.mxu0 0.0
    %2480 = vmatpush1.msra.mxu0 %v2231
    %2481 = vmatprep.subr.mxu0 0.0
    %2482 = vmatpush1.msra.mxu0 %v2232
    %2483 = vmatprep.subr.mxu0 0.0
    %2484 = vmatpush1.msra.mxu0 %v2233
    %2485 = vmatprep.subr.mxu0 0.0
    %2486 = vmatpush1.msra.mxu0 %v2234
    %2487 = vmatprep.subr.mxu0 0.0
    %2488 = vmatpush1.msra.mxu0 %v2235
    %2489 = vmatprep.subr.mxu0 0.0
    %2490 = vmatpush1.msra.mxu0 %v2236
    %2491 = vmatprep.subr.mxu0 0.0
    %2492 = vmatpush1.msra.mxu0 %v2237
    %2493 = vmatprep.subr.mxu0 0.0
    %2494 = vmatpush1.msra.mxu0 %v2238
    %2495 = vmatprep.subr.mxu0 0.0
    %2496 = vmatpush1.msra.mxu0 %v2239
    %2497 = vmatprep.subr.mxu0 0.0
    %2498 = vmatpush1.msra.mxu0 %v2240
    %2499 = vmatprep.subr.mxu0 0.0
    %2500 = vmatpush1.msra.mxu0 %v2241
    %2501 = vmatprep.subr.mxu0 0.0
    %2502 = vmatpush1.msra.mxu0 %v2242
    %2503 = vmatprep.subr.mxu0 0.0
    %2504 = vmatpush1.msra.mxu0 %v2243
    %2505 = vmatprep.subr.mxu0 0.0
    %2506 = vmatpush1.msra.mxu0 %v2244
    %2507 = vmatprep.subr.mxu0 0.0
    %2508 = vmatpush1.msra.mxu0 %v2245
    %2509 = vmatprep.subr.mxu0 0.0
    %2510 = vmatpush1.msra.mxu0 %v2246
    %2511 = vmatprep.subr.mxu0 0.0
    %2512 = vmatpush1.msra.mxu0 %v2247
    %2513 = vmatprep.subr.mxu0 0.0
    %2514 = vmatpush1.msra.mxu0 0.0
    %2515 = vmatprep.subr.mxu0 0.0
    %2516 = vmatpush1.msra.mxu0 0.0
    %2517 = vmatprep.subr.mxu0 0.0
    %2518 = vmatpush1.msra.mxu0 0.0
    %2519 = vmatprep.subr.mxu0 0.0
    %2520 = vmatpush1.msra.mxu0 0.0
    %2521 = vmatprep.subr.mxu0 0.0
    %2522 = vmatpush1.msra.mxu0 0.0
    %2523 = vmatprep.subr.mxu0 0.0
    %2524 = vmatpush1.msra.mxu0 0.0
    %2525 = vmatprep.subr.mxu0 0.0
    %2526 = vmatpush1.msra.mxu0 0.0
    %2527 = vmatprep.subr.mxu0 0.0
    %2528 = vmatpush1.msra.mxu0 0.0
    %2529 = vmatprep.mubr.f32.mxu0 %v2394
    %2530 = vmatmul.mubr.f32.gmra.mrb[0].mxu0 %v2248
    %v2531 = vpop.f32.mrb[0].mxu0
    %v2532 = vadd.f32 %v2298, %v2531
    %v2533 = vpop.f32.mrb[0].mxu0
    %2534 = vmatprep.mubr.f32.mxu0 %v2397
    %2535 = vmatmul.mubr.f32.gmra.mrb[0].mxu0 %v2250
    %v2536 = vpop.f32.mrb[0].mxu0
    %v2537 = vadd.f32 %v2302, %v2536
    %v2538 = vpop.f32.mrb[0].mxu0
    %2539 = vmatprep.mubr.f32.mxu0 %v2400
    %2540 = vmatmul.mubr.f32.gmra.mrb[0].mxu0 %v2252
    %v2541 = vpop.f32.mrb[0].mxu0
    %v2542 = vadd.f32 %v2306, %v2541
    %v2543 = vpop.f32.mrb[0].mxu0
    %2544 = vmatprep.mubr.f32.mxu0 %v2403
    %2545 = vmatmul.mubr.f32.gmra.mrb[0].mxu0 %v2254
    %v2546 = vpop.f32.mrb[0].mxu0
    %v2547 = vadd.f32 %v2310, %v2546
    %v2548 = vpop.f32.mrb[0].mxu0
    %2549 = vmatprep.mubr.f32.mxu0 %v2406
    %2550 = vmatmul.mubr.f32.gmra.mrb[0].mxu0 %v2256
    %v2551 = vpop.f32.mrb[0].mxu0
    %v2552 = vadd.f32 %v2314, %v2551
    %v2553 = vpop.f32.mrb[0].mxu0
    %2554 = vmatprep.mubr.f32.mxu0 %v2409
    %2555 = vmatmul.mubr.f32.gmra.mrb[0].mxu0 %v2258
    %v2556 = vpop.f32.mrb[0].mxu0
    %v2557 = vadd.f32 %v2318, %v2556
    %v2558 = vpop.f32.mrb[0].mxu0
    %2559 = vmatprep.mubr.f32.mxu0 %v2412
    %2560 = vmatmul.mubr.f32.gmra.mrb[0].mxu0 %v2260
    %v2561 = vpop.f32.mrb[0].mxu0
    %v2562 = vadd.f32 %v2322, %v2561
    %v2563 = vpop.f32.mrb[0].mxu0
    %2564 = vmatprep.mubr.f32.mxu0 %v2415
    %2565 = vmatmul.mubr.f32.gmra.mrb[0].mxu0 %v2262
    %v2566 = vpop.f32.mrb[0].mxu0
    %v2567 = vadd.f32 %v2326, %v2566
    %v2568 = vpop.f32.mrb[0].mxu0
    %2569 = vmatprep.mubr.f32.mxu0 %v2418
    %2570 = vmatmul.mubr.f32.gmra.mrb[0].mxu0 %v2264
    %v2571 = vpop.f32.mrb[0].mxu0
    %v2572 = vadd.f32 %v2330, %v2571
    %v2573 = vpop.f32.mrb[0].mxu0
    %2574 = vmatprep.mubr.f32.mxu0 %v2421
    %2575 = vmatmul.mubr.f32.gmra.mrb[0].mxu0 %v2266
    %v2576 = vpop.f32.mrb[0].mxu0
    %v2577 = vadd.f32 %v2334, %v2576
    %v2578 = vpop.f32.mrb[0].mxu0
    %2579 = vmatprep.mubr.f32.mxu0 %v2424
    %2580 = vmatmul.mubr.f32.gmra.mrb[0].mxu0 %v2268
    %v2581 = vpop.f32.mrb[0].mxu0
    %v2582 = vadd.f32 %v2338, %v2581
    %v2583 = vpop.f32.mrb[0].mxu0
    %2584 = vmatprep.mubr.f32.mxu0 %v2427
    %2585 = vmatmul.mubr.f32.gmra.mrb[0].mxu0 %v2270
    %v2586 = vpop.f32.mrb[0].mxu0
    %v2587 = vadd.f32 %v2342, %v2586
    %v2588 = vpop.f32.mrb[0].mxu0
    %2589 = vmatprep.mubr.f32.mxu0 %v2430
    %2590 = vmatmul.mubr.f32.gmra.mrb[0].mxu0 %v2272
    %v2591 = vpop.f32.mrb[0].mxu0
    %v2592 = vadd.f32 %v2346, %v2591
    %v2593 = vpop.f32.mrb[0].mxu0
    %2594 = vmatprep.mubr.f32.mxu0 %v2433
    %2595 = vmatmul.mubr.f32.gmra.mrb[0].mxu0 %v2274
    %v2596 = vpop.f32.mrb[0].mxu0
    %v2597 = vadd.f32 %v2350, %v2596
    %v2598 = vpop.f32.mrb[0].mxu0
    %2599 = vmatprep.mubr.f32.mxu0 %v2436
    %2600 = vmatmul.mubr.f32.gmra.mrb[0].mxu0 %v2276
    %v2601 = vpop.f32.mrb[0].mxu0
    %v2602 = vadd.f32 %v2354, %v2601
    %v2603 = vpop.f32.mrb[0].mxu0
    %2604 = vmatprep.mubr.f32.mxu0 %v2439
    %2605 = vmatmul.mubr.f32.gmra.mrb[0].mxu0 %v2278
    %v2606 = vpop.f32.mrb[0].mxu0
    %v2607 = vadd.f32 %v2358, %v2606
    %v2608 = vpop.f32.mrb[0].mxu0
    %2609 = vmatprep.mubr.f32.mxu0 %v2442
    %2610 = vmatmul.mubr.f32.gmra.mrb[0].mxu0 %v2280
    %v2611 = vpop.f32.mrb[0].mxu0
    %v2612 = vadd.f32 %v2362, %v2611
    %v2613 = vpop.f32.mrb[0].mxu0
    %2614 = vmatprep.mubr.f32.mxu0 %v2445
    %2615 = vmatmul.mubr.f32.gmra.mrb[0].mxu0 %v2282
    %v2616 = vpop.f32.mrb[0].mxu0
    %v2617 = vadd.f32 %v2366, %v2616
    %v2618 = vpop.f32.mrb[0].mxu0
    %2619 = vmatprep.mubr.f32.mxu0 %v2448
    %2620 = vmatmul.mubr.f32.gmra.mrb[0].mxu0 %v2284
    %v2621 = vpop.f32.mrb[0].mxu0
    %v2622 = vadd.f32 %v2370, %v2621
    %v2623 = vpop.f32.mrb[0].mxu0
    %2624 = vmatprep.mubr.f32.mxu0 %v2451
    %2625 = vmatmul.mubr.f32.gmra.mrb[0].mxu0 %v2286
    %v2626 = vpop.f32.mrb[0].mxu0
    %v2627 = vadd.f32 %v2374, %v2626
    %v2628 = vpop.f32.mrb[0].mxu0
    %2629 = vmatprep.mubr.f32.mxu0 %v2454
    %2630 = vmatmul.mubr.f32.gmra.mrb[0].mxu0 %v2288
    %v2631 = vpop.f32.mrb[0].mxu0
    %v2632 = vadd.f32 %v2378, %v2631
    %v2633 = vpop.f32.mrb[0].mxu0
    %2634 = vmatprep.mubr.f32.mxu0 %v2457
    %2635 = vmatmul.mubr.f32.gmra.mrb[0].mxu0 %v2290
    %v2636 = vpop.f32.mrb[0].mxu0
    %v2637 = vadd.f32 %v2382, %v2636
    %v2638 = vpop.f32.mrb[0].mxu0
    %2639 = vmatprep.mubr.f32.mxu0 %v2460
    %2640 = vmatmul.mubr.f32.gmra.mrb[0].mxu0 %v2292
    %v2641 = vpop.f32.mrb[0].mxu0
    %v2642 = vadd.f32 %v2386, %v2641
    %v2643 = vpop.f32.mrb[0].mxu0
    %2644 = vmatprep.mubr.f32.mxu0 %v2463
    %2645 = vmatmul.mubr.f32.gmra.mrb[0].mxu0 %v2294
    %v2646 = vpop.f32.mrb[0].mxu0
    %v2647 = vadd.f32 %v2390, %v2646
    %v2648 = vpop.f32.mrb[0].mxu0
    %2649 = vdwg.mxu0
    %v2650 = vadd.f32 %v2532, %v1801
    %v2651 = vadd.f32 %v2537, %v1806
    %v2652 = vadd.f32 %v2542, %v1811
    %v2653 = vadd.f32 %v2547, %v1816
    %v2654 = vadd.f32 %v2552, %v1821
    %v2655 = vadd.f32 %v2557, %v1826
    %v2656 = vadd.f32 %v2562, %v1831
    %v2657 = vadd.f32 %v2567, %v1836
    %v2658 = vadd.f32 %v2572, %v1841
    %v2659 = vadd.f32 %v2577, %v1846
    %v2660 = vadd.f32 %v2582, %v1851
    %v2661 = vadd.f32 %v2587, %v1856
    %v2662 = vadd.f32 %v2592, %v1861
    %v2663 = vadd.f32 %v2597, %v1866
    %v2664 = vadd.f32 %v2602, %v1871
    %v2665 = vadd.f32 %v2607, %v1876
    %v2666 = vadd.f32 %v2612, %v1881
    %v2667 = vadd.f32 %v2617, %v1886
    %v2668 = vadd.f32 %v2622, %v1891
    %v2669 = vadd.f32 %v2627, %v1896
    %v2670 = vadd.f32 %v2632, %v1901
    %v2671 = vadd.f32 %v2637, %v1906
    %v2672 = vadd.f32 %v2642, %v1911
    %v2673 = vadd.f32 %v2647, %v1916
    %v2674 = vmax.f32 %v2650, 0.0
    %v2675 = vmax.f32 %v2651, 0.0
    %v2676 = vmax.f32 %v2652, 0.0
    %v2677 = vmax.f32 %v2653, 0.0
    %v2678 = vmax.f32 %v2654, 0.0
    %v2679 = vmax.f32 %v2655, 0.0
    %v2680 = vmax.f32 %v2656, 0.0
    %v2681 = vmax.f32 %v2657, 0.0
    %v2682 = vmax.f32 %v2658, 0.0
    %v2683 = vmax.f32 %v2659, 0.0
    %v2684 = vmax.f32 %v2660, 0.0
    %v2685 = vmax.f32 %v2661, 0.0
    %v2686 = vmax.f32 %v2662, 0.0
    %v2687 = vmax.f32 %v2663, 0.0
    %v2688 = vmax.f32 %v2664, 0.0
    %v2689 = vmax.f32 %v2665, 0.0
    %v2690 = vmax.f32 %v2666, 0.0
    %v2691 = vmax.f32 %v2667, 0.0
    %v2692 = vmax.f32 %v2668, 0.0
    %v2693 = vmax.f32 %v2669, 0.0
    %v2694 = vmax.f32 %v2670, 0.0
    %v2695 = vmax.f32 %v2671, 0.0
    %v2696 = vmax.f32 %v2672, 0.0
    %v2697 = vmax.f32 %v2673, 0.0
    %v2698 = vmax.f32 %v2674, %v2677
    %v2699 = vmax.f32 %v2675, %v2678
    %v2700 = vmax.f32 %v2676, %v2679
    %v2701 = vmax.f32 %v2680, %v2683
    %v2702 = vmax.f32 %v2681, %v2684
    %v2703 = vmax.f32 %v2682, %v2685
    %v2704 = vmax.f32 %v2686, %v2689
    %v2705 = vmax.f32 %v2687, %v2690
    %v2706 = vmax.f32 %v2688, %v2691
    %v2707 = vmax.f32 %v2692, %v2695
    %v2708 = vmax.f32 %v2693, %v2696
    %v2709 = vmax.f32 %v2694, %v2697
    %v2710 = vld [vmem:[%s7] sm:$0xf]
    %2711 = vset.pattern.permute.xlu0 6
    %2712 = vperm.xlu0 %2711, %v90
    %v2713 = vpop.permute.xlu0 %2712
    %vm2715 = vcmask 785408
    %v2717 = vsel %vm2715, %v2710, 0
    %2719 = vmatprep.subr.mxu0 0.0
    %2720 = vmatpush1.msra.mxu0 %v2698
    %2721 = vmatprep.subr.mxu0 0.0
    %2722 = vmatpush1.msra.mxu0 %v2699
    %2723 = vmatprep.subr.mxu0 0.0
    %2724 = vmatpush1.msra.mxu0 %v2700
    %2725 = vmatprep.subr.mxu0 0.0
    %2726 = vmatpush1.msra.mxu0 %v2701
    %2727 = vmatprep.subr.mxu0 0.0
    %2728 = vmatpush1.msra.mxu0 %v2702
    %2729 = vmatprep.subr.mxu0 0.0
    %2730 = vmatpush1.msra.mxu0 %v2703
    %2731 = vmatprep.subr.mxu0 0.0
    %2732 = vmatpush1.msra.mxu0 %v2704
    %2733 = vmatprep.subr.mxu0 0.0
    %2734 = vmatpush1.msra.mxu0 %v2705
    %2735 = vmatprep.subr.mxu0 0.0
    %2736 = vmatpush1.msra.mxu0 %v2706
    %2737 = vmatprep.subr.mxu0 0.0
    %2738 = vmatpush1.msra.mxu0 %v2707
    %2739 = vmatprep.subr.mxu0 0.0
    %2740 = vmatpush1.msra.mxu0 %v2708
    %2741 = vmatprep.subr.mxu0 0.0
    %2742 = vmatpush1.msra.mxu0 %v2709
    %2743 = vmatprep.subr.mxu0 0.0
    %2744 = vmatpush1.msra.mxu0 0.0
    %2745 = vmatprep.subr.mxu0 0.0
    %2746 = vmatpush1.msra.mxu0 0.0
    %2747 = vmatprep.subr.mxu0 0.0
    %2748 = vmatpush1.msra.mxu0 0.0
    %2749 = vmatprep.subr.mxu0 0.0
    %2750 = vmatpush1.msra.mxu0 0.0
    %2751 = vmatprep.subr.mxu0 0.0
    %2752 = vmatpush1.msra.mxu0 0.0
    %2753 = vmatprep.subr.mxu0 0.0
    %2754 = vmatpush1.msra.mxu0 0.0
    %2755 = vmatprep.subr.mxu0 0.0
    %2756 = vmatpush1.msra.mxu0 0.0
    %2757 = vmatprep.subr.mxu0 0.0
    %2758 = vmatpush1.msra.mxu0 0.0
    %2759 = vmatprep.subr.mxu0 0.0
    %2760 = vmatpush1.msra.mxu0 0.0
    %2761 = vmatprep.subr.mxu0 0.0
    %2762 = vmatpush1.msra.mxu0 0.0
    %2763 = vmatprep.subr.mxu0 0.0
    %2764 = vmatpush1.msra.mxu0 0.0
    %2765 = vmatprep.subr.mxu0 0.0
    %2766 = vmatpush1.msra.mxu0 0.0
    %2767 = vmatprep.subr.mxu0 0.0
    %2768 = vmatpush1.msra.mxu0 0.0
    %2769 = vmatprep.subr.mxu0 0.0
    %2770 = vmatpush1.msra.mxu0 0.0
    %2771 = vmatprep.subr.mxu0 0.0
    %2772 = vmatpush1.msra.mxu0 0.0
    %2773 = vmatprep.subr.mxu0 0.0
    %2774 = vmatpush1.msra.mxu0 0.0
    %2775 = vmatprep.subr.mxu0 0.0
    %2776 = vmatpush1.msra.mxu0 0.0
    %2777 = vmatprep.subr.mxu0 0.0
    %2778 = vmatpush1.msra.mxu0 0.0
    %2779 = vmatprep.subr.mxu0 0.0
    %2780 = vmatpush1.msra.mxu0 0.0
    %2781 = vmatprep.subr.mxu0 0.0
    %2782 = vmatpush1.msra.mxu0 0.0
    %2783 = vmatprep.mubr.f32.mxu0 0.0
    %2784 = vmatmul.mubr.f32.gmra.mrb[0].mxu0 %v2717
    %v2785 = vpop.f32.mrb[0].mxu0
    %v2786 = vadd.f32 %v2713, %v2785
    %v2787 = vpop.f32.mrb[0].mxu0
    %2788 = vdwg.mxu0
    %vm2789 = vcmask 1043456
    %v2790 = vsel %vm2789, %v2786, -inf
    %v2791 = vrot.slane %v2790, 4
    %v2792 = vmax.f32 %v2790, %v2791
    %v2793 = vrot.slane %v2792, 2
    %v2794 = vmax.f32 %v2792, %v2793
    %v2795 = vrot.slane %v2794, 1
    %v2796 = vmax.f32 %v2794, %v2795
    %v2797 = vsub.f32 %v2786, %v2796
    %v2798 = vmul.f32 %v2797, 1.442695
    %v2799 = vpow.pop %v2798
    %v2800 = vsel %vm2789, %v2799, 0.0
    %v2801 = vrot.slane %v2800, 4
    %v2802 = vadd.f32 %v2800, %v2801
    %v2803 = vrot.slane %v2802, 2
    %v2804 = vadd.f32 %v2802, %v2803
    %v2805 = vrot.slane %v2804, 1
    %v2806 = vadd.f32 %v2804, %v2805
    %v2807 = vrcp.pop %v2806
    %v2808 = vmul.f32 %v2799, %v2807
    %2809 = vst [vmem:[#allocation10] sm:$0xf] %v2808
    // Predicated region
    $region54: #{tpu_custom_call.1} parent=1 // pred_check
      _
    $region55: #{tpu_custom_call.1} parent=1 // pred_check_branch
      %2811 = sbr.rel (0) target = $region57
    $region56: #{tpu_custom_call.1} parent=1 // pred_region
      %s2813 = ssub.s32 64, 64
      %2814 = vsyncadd [#allocation4], %s2813
      %s2816 = sshll.u32 [#allocation10], 4
      %s2817 = int_to_ptr.vmem [resolvable:$true] %s2816
      %2819 = dma.vmem_to_hbm [thread:$0]  %s2817, 64, %s9, [#allocation4]
    $region57: #{tpu_custom_call.1} parent=1 // pred_fallthru
      _
    // Predicated region
    $region58: #{tpu_custom_call.1} parent=1 // pred_check
      _
    $region59: #{tpu_custom_call.1} parent=1 // pred_check_branch
      %2821 = sbr.rel (0) target = $region61
    $region60: #{tpu_custom_call.1} parent=1 // pred_region
      %2822 = dma.done [#allocation4], 64
    $region61: #{tpu_custom_call.1} parent=1 // pred_fallthru
      _
    %2823 = vsyncpa [#allocation3], 1
    %2824 = vsyncpa [#allocation6], 1
    %2825 = vsyncpa [#allocation9], 1
    %2826 = vsyncpa [#allocation4], 1

</llo_original>
